<compile_context>
chip_gen: v5e
topology: v5e:2x2
jax: 0.10.0
libtpu: 0.0.40
codegen_flags: <defaults>
</compile_context>

<pallas_src>
import functools
import math

import numpy as np
import jax
import jax.numpy as jnp
from jax import lax
from jax.experimental import pallas as pl
from jax.experimental.pallas import tpu as pltpu


def _policy_head_kernel(action_dim, x_ref, w1_ref, b1_ref, w2_ref, b2_ref, o_ref):
    """Continuous policy head on one (TM, D) tile of sliced tokens.

    h = relu(x @ W1 + b1); y = h @ W2p + b2p; out = [tanh(mu) | softplus(sigma)].
    Matmuls run in bf16 on the MXU (f32 accumulate); elementwise work stays f32.
    The mu/sigma split uses a lane-index mask (no sub-128-lane slice/concat relayout);
    W2p/b2p are zero-padded to 128 lanes so the output store is a full-vreg vst.
    """
    x = x_ref[...]                                                  # (TM, D) bf16
    h = jnp.dot(x, w1_ref[...], preferred_element_type=jnp.float32)
    h = jnp.maximum(h + b1_ref[...], 0.0)                           # f32
    y = jnp.dot(h.astype(jnp.bfloat16), w2_ref[...],
                preferred_element_type=jnp.float32)
    y = y + b2_ref[...]                                             # (TM, N_PAD) f32

    lane = lax.broadcasted_iota(jnp.int32, y.shape, dimension=1)
    mu = jnp.tanh(y)
    # stable softplus: max(y, 0) + log(1 + exp(-|y|))
    # (log1p would only change results below ~1e-7 absolute; kept as log(1+t) since that
    #  lowering is verified on this toolchain)
    sigma = jnp.maximum(y, 0.0) + jnp.log(1.0 + jnp.exp(-jnp.abs(y)))
    o_ref[...] = jnp.where(lane < action_dim, mu, sigma).astype(o_ref.dtype)


class PolicyHeadContPallas:
    """PolicyHeadCont: Slicer index selection + continuous policy head (Pallas TPU)."""

    def __init__(self, max_blocks, block_mask, embed_dim, hidden_dim, action_dim, key,
                 tm=512):
        block_mask = np.asarray(block_mask).astype(bool)
        self.block_size = int(block_mask.shape[0])
        self.num_kept_tokens = int(block_mask.sum())

        # Same precompute as the torch Slicer (plain numpy glue; strictly increasing).
        kept = np.where(block_mask)[0].astype(np.int64)
        kept_rep = np.tile(kept, max_blocks)
        offsets = np.repeat(np.arange(max_blocks, dtype=np.int64), self.num_kept_tokens)
        self.indices = kept_rep + self.block_size * offsets

        self.embed_dim = int(embed_dim)
        self.hidden_dim = int(hidden_dim)
        self.action_dim = int(action_dim)
        self.out_dim = 2 * self.action_dim
        self.out_pad = ((self.out_dim + 127) // 128) * 128     # lane-dense output width
        self.tm = int(tm)                                       # M tile (multiple of 16)

        # Representative head parameters (head_module is injected in the torch spec).
        # Matmul operands stored bf16 (full MXU rate, half HBM/VMEM traffic); biases f32.
        k1, k2, k3, k4 = jax.random.split(key, 4)
        s1 = 1.0 / math.sqrt(embed_dim)
        s2 = 1.0 / math.sqrt(hidden_dim)
        self.w1 = (jax.random.normal(k1, (embed_dim, hidden_dim), jnp.float32) * s1
                   ).astype(jnp.bfloat16)
        self.b1 = jax.random.normal(k2, (1, hidden_dim), jnp.float32) * 0.1
        w2 = jax.random.normal(k3, (hidden_dim, self.out_dim), jnp.float32) * s2
        b2 = jax.random.normal(k4, (1, self.out_dim), jnp.float32) * 0.1
        pad = self.out_pad - self.out_dim
        self.w2p = jnp.pad(w2, ((0, 0), (0, pad))).astype(jnp.bfloat16)
        self.b2p = jnp.pad(b2, ((0, 0), (0, pad)))

        self._pallas_cache = {}   # pallas_call callable per padded token count
        self._jit_cache = {}      # jitted full-forward path per static shape

    # ---- Slicer.compute_slice: host-side, O(log N) (indices strictly increasing) ----
    def compute_slice(self, num_steps: int, prev_steps: int = 0) -> np.ndarray:
        total = num_steps + prev_steps
        num_blocks = math.ceil(total / self.block_size)
        ind = self.indices[: num_blocks * self.num_kept_tokens]
        start = int(np.searchsorted(ind, prev_steps, side="left"))
        stop = int(np.searchsorted(ind, total, side="left"))
        return (ind[start:stop] - prev_steps).astype(np.int64)

    # ---- Pallas head: grid over M, weights VMEM-resident, lane-dense output ----
    def _pallas_head(self, m_pad: int):
        if m_pad in self._pallas_cache:
            return self._pallas_cache[m_pad]
        tm, d, hdim, n = self.tm, self.embed_dim, self.hidden_dim, self.out_pad
        grid = (m_pad // tm,)
        cost = pl.CostEstimate(
            flops=2 * m_pad * (d * hdim + hdim * n),
            transcendentals=3 * m_pad * n,
            bytes_accessed=(m_pad * d * 2 + d * hdim * 2 + hdim * n * 2
                            + (hdim + n) * 4 + m_pad * n * 4),
        )
        call = pl.pallas_call(
            functools.partial(_policy_head_kernel, self.action_dim),
            grid=grid,
            in_specs=[
                pl.BlockSpec((tm, d), lambda i: (i, 0)),      # x tile (bf16)
                pl.BlockSpec((d, hdim), lambda i: (0, 0)),    # w1, pinned / VMEM-resident
                pl.BlockSpec((1, hdim), lambda i: (0, 0)),    # b1
                pl.BlockSpec((hdim, n), lambda i: (0, 0)),    # w2, padded to 128 lanes
                pl.BlockSpec((1, n), lambda i: (0, 0)),       # b2
            ],
            out_specs=pl.BlockSpec((tm, n), lambda i: (i, 0)),
            out_shape=jax.ShapeDtypeStruct((m_pad, n), jnp.float32),
            compiler_params=pltpu.CompilerParams(dimension_semantics=("parallel",)),
            cost_estimate=cost,
        )
        self._pallas_cache[m_pad] = call
        return call

    def _apply_head(self, tokens, w1, b1, w2p, b2p):
        """Trace-time helper: pad M to a tile multiple, bf16 cast, run kernel, unpad."""
        m, _ = tokens.shape
        tm = self.tm
        m_pad = ((m + tm - 1) // tm) * tm
        if m_pad != m:
            tokens = jnp.pad(tokens, ((0, m_pad - m), (0, 0)))
        tokens = tokens.astype(jnp.bfloat16)
        out = self._pallas_head(m_pad)(tokens, w1, b1, w2p, b2p)
        return out[:m, :self.out_dim]

    def _fwd_int(self, b, s, t, d):
        key = ("int", b, s, t, d)
        if key not in self._jit_cache:
            out_dim = self.out_dim

            def fn(x, idx, w1, b1, w2p, b2p):
                xs = jnp.take(x, idx, axis=1)                       # (b, s, d)
                out = self._apply_head(xs.reshape(b * s, d), w1, b1, w2p, b2p)
                return out.reshape(b, s, out_dim)

            self._jit_cache[key] = jax.jit(fn)
        return self._jit_cache[key]

    def _fwd_flat(self, m, b, t, d):
        key = ("flat", m, b, t, d)
        if key not in self._jit_cache:

            def fn(x, flat_idx, w1, b1, w2p, b2p):
                tokens = jnp.take(x.reshape(b * t, d), flat_idx, axis=0)   # (m, d)
                return self._apply_head(tokens, w1, b1, w2p, b2p)

            self._jit_cache[key] = jax.jit(fn)
        return self._jit_cache[key]

    # ---- PolicyHeadCont.forward ----
    def forward(self, x, num_steps, prev_steps):
        x = jnp.asarray(x, jnp.float32)                              # (B, T, D)
        b, t, d = x.shape
        if isinstance(prev_steps, (int, np.integer)):
            idx = self.compute_slice(num_steps, int(prev_steps))
            s = int(idx.shape[0])
            if s == 0:
                return jnp.zeros((b, 0, self.out_dim), jnp.float32)
            fn = self._fwd_int(b, s, t, d)
            return fn(x, jnp.asarray(idx, jnp.int32),
                      self.w1, self.b1, self.w2p, self.b2p)
        # per-batch prev_steps (tensor path): one flat gather index, single take.
        prev = np.asarray(prev_steps).astype(np.int64)
        parts = [i * t + self.compute_slice(num_steps, int(prev[i]))
                 for i in range(prev.shape[0])]
        flat_idx = np.concatenate(parts) if parts else np.zeros((0,), np.int64)
        m = int(flat_idx.shape[0])
        if m == 0:
            return jnp.zeros((0, self.out_dim), jnp.float32)
        fn = self._fwd_flat(m, b, t, d)
        return fn(x, jnp.asarray(flat_idx, jnp.int32),
                  self.w1, self.b1, self.w2p, self.b2p)

    __call__ = forward


if __name__ == "__main__":
    key = jax.random.PRNGKey(0)
    k_mask, k_x, k_head = jax.random.split(key, 3)

    block_size = 8
    max_blocks = 4
    batch = 2
    embed_dim = 32
    hidden_dim = 32
    action_dim = 4
    seq = max_blocks * block_size                                    # 32

    block_mask = np.asarray(jax.random.bernoulli(k_mask, p=0.6, shape=(block_size,)))
    if not block_mask.any():
        block_mask[0] = True

    head = PolicyHeadContPallas(max_blocks, block_mask, embed_dim, hidden_dim,
                                action_dim, k_head)

    x = jax.random.normal(k_x, (batch, seq, embed_dim), jnp.float32)
    x_np = np.asarray(x)

    # --- references: torch-cache semantics + numpy head on bf16-rounded matmul operands ---
    def bf16_round(a):
        return np.asarray(jnp.asarray(a, jnp.float32).astype(jnp.bfloat16)
                          .astype(jnp.float32))

    w1 = np.asarray(head.w1.astype(jnp.float32))                     # bf16-valued
    b1 = np.asarray(head.b1)
    w2 = np.asarray(head.w2p.astype(jnp.float32))[:, :2 * action_dim]
    b2 = np.asarray(head.b2p)[:, :2 * action_dim]
    xr = bf16_round(x_np)

    def ref_slice(num_steps, prev_steps):
        total = num_steps + prev_steps
        num_blocks = math.ceil(total / block_size)
        ind = head.indices[: num_blocks * head.num_kept_tokens]
        return ind[(prev_steps <= ind) & (ind < total)] - prev_steps

    def ref_head(tokens_rounded):
        h = np.maximum(tokens_rounded @ w1 + b1, 0.0)
        h = bf16_round(h)
        y = h @ w2 + b2
        mu = np.tanh(y[..., :action_dim])
        ys = y[..., action_dim:]
        sig = np.maximum(ys, 0.0) + np.log1p(np.exp(-np.abs(ys)))
        return np.concatenate([mu, sig], axis=-1)

    ok = True

    # 1) compute_slice matches the torch-cache semantics for every (num_steps, prev_steps)
    for ns in range(seq + 1):
        for ps in range(seq + 1):
            got = head.compute_slice(ns, ps)
            want = ref_slice(ns, ps)
            if got.shape != want.shape or not np.array_equal(got, want):
                ok = False
                print("SLICE MISMATCH", (ns, ps), got, want)

    # 2) forward, int prev_steps path
    for ns, ps in [(seq, 0), (16, 8), (5, 3), (block_size, block_size)]:
        idx = ref_slice(ns, ps)
        want = ref_head(xr[:, idx, :])
        got = np.asarray(jax.block_until_ready(head.forward(x, ns, ps)))
        if got.shape != want.shape or not np.allclose(got, want, rtol=5e-3, atol=5e-3):
            ok = False
            print("FWD(int) MISMATCH", (ns, ps), got.shape, want.shape,
                  float(np.max(np.abs(got - want))) if got.shape == want.shape else None)

    # 3) forward, per-batch (tensor) prev_steps path
    prev_arr = np.array([3, 8], dtype=np.int64)
    ns_t = 12
    parts = [xr[i, ref_slice(ns_t, int(prev_arr[i])), :] for i in range(batch)]
    want_t = ref_head(np.concatenate(parts, axis=0))
    got_t = np.asarray(jax.block_until_ready(head.forward(x, ns_t, prev_arr)))
    if got_t.shape != want_t.shape or not np.allclose(got_t, want_t, rtol=5e-3, atol=5e-3):
        ok = False
        print("FWD(tensor) MISMATCH", got_t.shape, want_t.shape,
              float(np.max(np.abs(got_t - want_t))) if got_t.shape == want_t.shape else None)

    if ok:
        print("KERNEL_OK")
</pallas_src>

<mosaic_0001>
module attributes {stable_mosaic.version = 11 : i64} {
  func.func @_policy_head_kernel(%arg0: i32, %arg1: memref<512x32xbf16, #tpu.memory_space<vmem>>, %arg2: memref<32x32xbf16, #tpu.memory_space<vmem>>, %arg3: memref<1x32xf32, #tpu.memory_space<vmem>>, %arg4: memref<32x128xbf16, #tpu.memory_space<vmem>>, %arg5: memref<1x128xf32, #tpu.memory_space<vmem>>, %arg6: memref<512x128xf32, #tpu.memory_space<vmem>>) attributes {dimension_semantics = [#tpu.dimension_semantics<parallel>], iteration_bounds = array<i64: 1>, scalar_prefetch = 0 : i64, scratch_operands = 0 : i64, tpu.core_type = #tpu.core_type<tc>, window_params = [{transform_indices = @transform_0, window_bounds = array<i64: 512, 32>}, {pipeline_mode = #tpu.pipeline_mode<synchronous>, transform_indices = @transform_1, window_bounds = array<i64: 32, 32>}, {pipeline_mode = #tpu.pipeline_mode<synchronous>, transform_indices = @transform_2, window_bounds = array<i64: 1, 32>}, {pipeline_mode = #tpu.pipeline_mode<synchronous>, transform_indices = @transform_3, window_bounds = array<i64: 32, 128>}, {pipeline_mode = #tpu.pipeline_mode<synchronous>, transform_indices = @transform_4, window_bounds = array<i64: 1, 128>}, {transform_indices = @transform_5, window_bounds = array<i64: 512, 128>}]} {
    %c0 = arith.constant 0 : index
    %c0_0 = arith.constant 0 : index
    %0 = vector.load %arg1[%c0, %c0_0] : memref<512x32xbf16, #tpu.memory_space<vmem>>, vector<512x32xbf16>
    %c0_1 = arith.constant 0 : index
    %c0_2 = arith.constant 0 : index
    %1 = vector.load %arg2[%c0_1, %c0_2] : memref<32x32xbf16, #tpu.memory_space<vmem>>, vector<32x32xbf16>
    %cst = arith.constant dense<0.000000e+00> : vector<512x32xf32>
    %2 = tpu.matmul %0, %1, %cst {dimension_numbers = #tpu.dot_dimension_numbers<[1], [0], [0], [1], [0, 0, 1, 1], [], []>} : vector<512x32xbf16>, vector<32x32xbf16>, vector<512x32xf32> -> vector<512x32xf32>
    %c0_3 = arith.constant 0 : index
    %c0_4 = arith.constant 0 : index
    %3 = vector.load %arg3[%c0_3, %c0_4] : memref<1x32xf32, #tpu.memory_space<vmem>>, vector<1x32xf32>
    %4 = vector.broadcast %3 : vector<1x32xf32> to vector<512x32xf32>
    %5 = arith.addf %2, %4 : vector<512x32xf32>
    %cst_5 = arith.constant 0.000000e+00 : f32
    %6 = vector.broadcast %cst_5 : f32 to vector<512x32xf32>
    %7 = arith.maximumf %5, %6 : vector<512x32xf32>
    %8 = arith.truncf %7 : vector<512x32xf32> to vector<512x32xbf16>
    %c0_6 = arith.constant 0 : index
    %c0_7 = arith.constant 0 : index
    %9 = vector.load %arg4[%c0_6, %c0_7] : memref<32x128xbf16, #tpu.memory_space<vmem>>, vector<32x128xbf16>
    %cst_8 = arith.constant dense<0.000000e+00> : vector<512x128xf32>
    %10 = tpu.matmul %8, %9, %cst_8 {dimension_numbers = #tpu.dot_dimension_numbers<[1], [0], [0], [1], [0, 0, 1, 1], [], []>} : vector<512x32xbf16>, vector<32x128xbf16>, vector<512x128xf32> -> vector<512x128xf32>
    %c0_9 = arith.constant 0 : index
    %c0_10 = arith.constant 0 : index
    %11 = vector.load %arg5[%c0_9, %c0_10] : memref<1x128xf32, #tpu.memory_space<vmem>>, vector<1x128xf32>
    %12 = vector.broadcast %11 : vector<1x128xf32> to vector<512x128xf32>
    %13 = arith.addf %10, %12 : vector<512x128xf32>
    %14 = tpu.iota {dimensions = array<i32: 1>} : vector<512x128xi32>
    %15 = math.tanh %13 : vector<512x128xf32>
    %cst_11 = arith.constant 0.000000e+00 : f32
    %16 = vector.broadcast %cst_11 : f32 to vector<512x128xf32>
    %17 = arith.maximumf %13, %16 : vector<512x128xf32>
    %18 = math.absf %13 : vector<512x128xf32>
    %cst_12 = arith.constant 0.000000e+00 : f32
    %19 = vector.broadcast %cst_12 : f32 to vector<512x128xf32>
    %20 = arith.subf %19, %18 : vector<512x128xf32>
    %21 = math.exp %20 : vector<512x128xf32>
    %cst_13 = arith.constant 1.000000e+00 : f32
    %22 = vector.broadcast %cst_13 : f32 to vector<512x128xf32>
    %23 = arith.addf %22, %21 : vector<512x128xf32>
    %24 = math.log %23 : vector<512x128xf32>
    %25 = arith.addf %17, %24 : vector<512x128xf32>
    %c4_i32 = arith.constant 4 : i32
    %26 = vector.broadcast %c4_i32 : i32 to vector<512x128xi32>
    %27 = arith.cmpi slt, %14, %26 : vector<512x128xi32>
    %28 = arith.select %27, %15, %25 : vector<512x128xi1>, vector<512x128xf32>
    %c0_14 = arith.constant 0 : index
    %c0_15 = arith.constant 0 : index
    %29 = vector.load %arg6[%c0_14, %c0_15] : memref<512x128xf32, #tpu.memory_space<vmem>>, vector<512x128xf32>
    tpu.vector_store %arg6[%c0_14, %c0_15], %28 {strides = array<i32>} : memref<512x128xf32, #tpu.memory_space<vmem>>, vector<512x128xf32>,
    return
  }
  func.func @transform_0(%arg0: i32) -> (i32, i32) {
    %c0_i32 = arith.constant 0 : i32
    %c0_i32_0 = arith.constant 0 : i32
    return %arg0, %c0_i32 : i32, i32
  }
  func.func @transform_1(%arg0: i32) -> (i32, i32) {
    %c0_i32 = arith.constant 0 : i32
    %c0_i32_0 = arith.constant 0 : i32
    %c0_i32_1 = arith.constant 0 : i32
    return %c0_i32, %c0_i32_0 : i32, i32
  }
  func.func @transform_2(%arg0: i32) -> (i32, i32) {
    %c0_i32 = arith.constant 0 : i32
    %c0_i32_0 = arith.constant 0 : i32
    %c0_i32_1 = arith.constant 0 : i32
    return %c0_i32, %c0_i32_0 : i32, i32
  }
  func.func @transform_3(%arg0: i32) -> (i32, i32) {
    %c0_i32 = arith.constant 0 : i32
    %c0_i32_0 = arith.constant 0 : i32
    %c0_i32_1 = arith.constant 0 : i32
    return %c0_i32, %c0_i32_0 : i32, i32
  }
  func.func @transform_4(%arg0: i32) -> (i32, i32) {
    %c0_i32 = arith.constant 0 : i32
    %c0_i32_0 = arith.constant 0 : i32
    %c0_i32_1 = arith.constant 0 : i32
    return %c0_i32, %c0_i32_0 : i32, i32
  }
  func.func @transform_5(%arg0: i32) -> (i32, i32) {
    %c0_i32 = arith.constant 0 : i32
    %c0_i32_0 = arith.constant 0 : i32
    return %arg0, %c0_i32 : i32, i32
  }
}

</mosaic_0001>

<llo_original>
// kernel: fn.1
$region0: #{fn.1}
  #allocation0 [shape = 'u32[]', space=smem, size = 0x4, offset = 0x4, fixed_abs, tag = 'smem constant byte address 0x4 - core index']
  #allocation1 [shape = 'u32[72,128]{1,0:T(1,128)}', space=vmem, size = 0x9000, scoped, tag = 'internal scratch']
  %s0 = inlined_call_operand.vmem [shape: bf16[512,32], index: 0, kind: input, shape index: {}]
  %s1 = inlined_call_operand.vmem [shape: bf16[32,32], index: 1, kind: input, shape index: {}]
  %s2 = inlined_call_operand.vmem [shape: f32[1,32], index: 2, kind: input, shape index: {}]
  %s3 = inlined_call_operand.vmem [shape: bf16[32,128], index: 3, kind: input, shape index: {}]
  %s4 = inlined_call_operand.vmem [shape: f32[1,128], index: 4, kind: input, shape index: {}]
  %s5 = inlined_call_operand.vmem [shape: f32[512,128], index: 5, kind: output, shape index: {}]
  %s6 = sld [smem:[#allocation0]]
  $region30: #{fn.1} parent=0
    _
  %s8 = ssub.s32 1, %s6
  %s9 = scalar_select 0, %s8, %s6
  // Predicated region
  $region2: #{fn.1} parent=0 // pred_check
    _
  $region3: #{fn.1} parent=0 // pred_check_branch
    %11 = sbr.rel (0) target = $region5
  $region4: #{fn.1} parent=0 // pred_region
    _
  $region5: #{fn.1} parent=0 // pred_fallthru
    _
  // Predicated region
  $region6: #{fn.1} parent=0 // pred_check
    _
  $region7: #{fn.1} parent=0 // pred_check_branch
    %13 = sbr.rel (0) target = $region9
  $region8: #{fn.1} parent=0 // pred_region
    _
  $region9: #{fn.1} parent=0 // pred_fallthru
    _
  // Predicated region
  $region10: #{fn.1} parent=0 // pred_check
    _
  $region11: #{fn.1} parent=0 // pred_check_branch
    %15 = sbr.rel (0) target = $region13
  $region12: #{fn.1} parent=0 // pred_region
    _
  $region13: #{fn.1} parent=0 // pred_fallthru
    _
  // Predicated region
  $region14: #{fn.1} parent=0 // pred_check
    _
  $region15: #{fn.1} parent=0 // pred_check_branch
    %17 = sbr.rel (0) target = $region17
  $region16: #{fn.1} parent=0 // pred_region
    _
  $region17: #{fn.1} parent=0 // pred_fallthru
    _
  // Predicated region
  $region18: #{fn.1} parent=0 // pred_check
    _
  $region19: #{fn.1} parent=0 // pred_check_branch
    %19 = sbr.rel (0) target = $region21
  $region20: #{fn.1} parent=0 // pred_region
    _
  $region21: #{fn.1} parent=0 // pred_fallthru
    _
  %v21 = vld [vmem:[%s0] sm:$0xf]
  %v22 = vld [vmem:[%s0 + $0x4] sm:$0xf]
  %v23 = vld [vmem:[%s0 + $0x8] sm:$0xf]
  %v24 = vld [vmem:[%s0 + $0xc] sm:$0xf]
  %v25 = vld [vmem:[%s0 + $0x10] sm:$0xf]
  %v26 = vld [vmem:[%s0 + $0x14] sm:$0xf]
  %v27 = vld [vmem:[%s0 + $0x18] sm:$0xf]
  %v28 = vld [vmem:[%s0 + $0x1c] sm:$0xf]
  %v29 = vld [vmem:[%s0 + $0x20] sm:$0xf]
  %v30 = vld [vmem:[%s0 + $0x24] sm:$0xf]
  %v31 = vld [vmem:[%s0 + $0x28] sm:$0xf]
  %v32 = vld [vmem:[%s0 + $0x2c] sm:$0xf]
  %v33 = vld [vmem:[%s0 + $0x30] sm:$0xf]
  %v34 = vld [vmem:[%s0 + $0x34] sm:$0xf]
  %v35 = vld [vmem:[%s0 + $0x38] sm:$0xf]
  %v36 = vld [vmem:[%s0 + $0x3c] sm:$0xf]
  %v37 = vld [vmem:[%s0 + $0x40] sm:$0xf]
  %v38 = vld [vmem:[%s0 + $0x44] sm:$0xf]
  %v39 = vld [vmem:[%s0 + $0x48] sm:$0xf]
  %v40 = vld [vmem:[%s0 + $0x4c] sm:$0xf]
  %v41 = vld [vmem:[%s0 + $0x50] sm:$0xf]
  %v42 = vld [vmem:[%s0 + $0x54] sm:$0xf]
  %v43 = vld [vmem:[%s0 + $0x58] sm:$0xf]
  %v44 = vld [vmem:[%s0 + $0x5c] sm:$0xf]
  %v45 = vld [vmem:[%s0 + $0x60] sm:$0xf]
  %v46 = vld [vmem:[%s0 + $0x64] sm:$0xf]
  %v47 = vld [vmem:[%s0 + $0x68] sm:$0xf]
  %v48 = vld [vmem:[%s0 + $0x6c] sm:$0xf]
  %v49 = vld [vmem:[%s0 + $0x70] sm:$0xf]
  %v50 = vld [vmem:[%s0 + $0x74] sm:$0xf]
  %v51 = vld [vmem:[%s0 + $0x78] sm:$0xf]
  %v52 = vld [vmem:[%s0 + $0x7c] sm:$0xf]
  %v53 = vld [vmem:[%s0 + $0x80] sm:$0xf]
  %v54 = vld [vmem:[%s0 + $0x84] sm:$0xf]
  %v55 = vld [vmem:[%s0 + $0x88] sm:$0xf]
  %v56 = vld [vmem:[%s0 + $0x8c] sm:$0xf]
  %v57 = vld [vmem:[%s0 + $0x90] sm:$0xf]
  %v58 = vld [vmem:[%s0 + $0x94] sm:$0xf]
  %v59 = vld [vmem:[%s0 + $0x98] sm:$0xf]
  %v60 = vld [vmem:[%s0 + $0x9c] sm:$0xf]
  %v61 = vld [vmem:[%s0 + $0xa0] sm:$0xf]
  %v62 = vld [vmem:[%s0 + $0xa4] sm:$0xf]
  %v63 = vld [vmem:[%s0 + $0xa8] sm:$0xf]
  %v64 = vld [vmem:[%s0 + $0xac] sm:$0xf]
  %v65 = vld [vmem:[%s0 + $0xb0] sm:$0xf]
  %v66 = vld [vmem:[%s0 + $0xb4] sm:$0xf]
  %v67 = vld [vmem:[%s0 + $0xb8] sm:$0xf]
  %v68 = vld [vmem:[%s0 + $0xbc] sm:$0xf]
  %v69 = vld [vmem:[%s0 + $0xc0] sm:$0xf]
  %v70 = vld [vmem:[%s0 + $0xc4] sm:$0xf]
  %v71 = vld [vmem:[%s0 + $0xc8] sm:$0xf]
  %v72 = vld [vmem:[%s0 + $0xcc] sm:$0xf]
  %v73 = vld [vmem:[%s0 + $0xd0] sm:$0xf]
  %v74 = vld [vmem:[%s0 + $0xd4] sm:$0xf]
  %v75 = vld [vmem:[%s0 + $0xd8] sm:$0xf]
  %v76 = vld [vmem:[%s0 + $0xdc] sm:$0xf]
  %v77 = vld [vmem:[%s0 + $0xe0] sm:$0xf]
  %v78 = vld [vmem:[%s0 + $0xe4] sm:$0xf]
  %v79 = vld [vmem:[%s0 + $0xe8] sm:$0xf]
  %v80 = vld [vmem:[%s0 + $0xec] sm:$0xf]
  %v81 = vld [vmem:[%s0 + $0xf0] sm:$0xf]
  %v82 = vld [vmem:[%s0 + $0xf4] sm:$0xf]
  %v83 = vld [vmem:[%s0 + $0xf8] sm:$0xf]
  %v84 = vld [vmem:[%s0 + $0xfc] sm:$0xf]
  %v85 = vld [vmem:[%s1] sm:$0xf]
  %v86 = vld [vmem:[%s1 + $0x4] sm:$0xf]
  %v87 = vld [vmem:[%s1 + $0x8] sm:$0xf]
  %v88 = vld [vmem:[%s1 + $0xc] sm:$0xf]
  %v89 = vld [vmem:[%s2] sm:$0x1]
  %v91 = vperm.slane %v89, 0
  %v157 = vunpack.c.l.b16 %v21
  %v158 = vunpack.c.l.b16 %v22
  %v159 = vunpack.c.l.b16 %v23
  %v160 = vunpack.c.l.b16 %v24
  %v161 = vunpack.c.l.b16 %v25
  %v162 = vunpack.c.l.b16 %v26
  %v163 = vunpack.c.l.b16 %v27
  %v164 = vunpack.c.l.b16 %v28
  %v165 = vunpack.c.l.b16 %v29
  %v166 = vunpack.c.l.b16 %v30
  %v167 = vunpack.c.l.b16 %v31
  %v168 = vunpack.c.l.b16 %v32
  %v169 = vunpack.c.l.b16 %v33
  %v170 = vunpack.c.l.b16 %v34
  %v171 = vunpack.c.l.b16 %v35
  %v172 = vunpack.c.l.b16 %v36
  %v173 = vunpack.c.l.b16 %v37
  %v174 = vunpack.c.l.b16 %v38
  %v175 = vunpack.c.l.b16 %v39
  %v176 = vunpack.c.l.b16 %v40
  %v177 = vunpack.c.l.b16 %v41
  %v178 = vunpack.c.l.b16 %v42
  %v179 = vunpack.c.l.b16 %v43
  %v180 = vunpack.c.l.b16 %v44
  %v181 = vunpack.c.l.b16 %v45
  %v182 = vunpack.c.l.b16 %v46
  %v183 = vunpack.c.l.b16 %v47
  %v184 = vunpack.c.l.b16 %v48
  %v185 = vunpack.c.l.b16 %v49
  %v186 = vunpack.c.l.b16 %v50
  %v187 = vunpack.c.l.b16 %v51
  %v188 = vunpack.c.l.b16 %v52
  %v189 = vunpack.c.l.b16 %v53
  %v190 = vunpack.c.l.b16 %v54
  %v191 = vunpack.c.l.b16 %v55
  %v192 = vunpack.c.l.b16 %v56
  %v193 = vunpack.c.l.b16 %v57
  %v194 = vunpack.c.l.b16 %v58
  %v195 = vunpack.c.l.b16 %v59
  %v196 = vunpack.c.l.b16 %v60
  %v197 = vunpack.c.l.b16 %v61
  %v198 = vunpack.c.l.b16 %v62
  %v199 = vunpack.c.l.b16 %v63
  %v200 = vunpack.c.l.b16 %v64
  %v201 = vunpack.c.l.b16 %v65
  %v202 = vunpack.c.l.b16 %v66
  %v203 = vunpack.c.l.b16 %v67
  %v204 = vunpack.c.l.b16 %v68
  %v205 = vunpack.c.l.b16 %v69
  %v206 = vunpack.c.l.b16 %v70
  %v207 = vunpack.c.l.b16 %v71
  %v208 = vunpack.c.l.b16 %v72
  %v209 = vunpack.c.l.b16 %v73
  %v210 = vunpack.c.l.b16 %v74
  %v211 = vunpack.c.l.b16 %v75
  %v212 = vunpack.c.l.b16 %v76
  %v213 = vunpack.c.l.b16 %v77
  %v214 = vunpack.c.l.b16 %v78
  %v215 = vunpack.c.l.b16 %v79
  %v216 = vunpack.c.l.b16 %v80
  %v217 = vunpack.c.l.b16 %v81
  %v218 = vunpack.c.l.b16 %v82
  %v219 = vunpack.c.l.b16 %v83
  %v220 = vunpack.c.l.b16 %v84
  %v221 = vpack.c.b16 %v158, %v157
  %v222 = vpack.c.b16 %v160, %v159
  %v223 = vpack.c.b16 %v162, %v161
  %v224 = vpack.c.b16 %v164, %v163
  %v225 = vpack.c.b16 %v166, %v165
  %v226 = vpack.c.b16 %v168, %v167
  %v227 = vpack.c.b16 %v170, %v169
  %v228 = vpack.c.b16 %v172, %v171
  %v229 = vpack.c.b16 %v174, %v173
  %v230 = vpack.c.b16 %v176, %v175
  %v231 = vpack.c.b16 %v178, %v177
  %v232 = vpack.c.b16 %v180, %v179
  %v233 = vpack.c.b16 %v182, %v181
  %v234 = vpack.c.b16 %v184, %v183
  %v235 = vpack.c.b16 %v186, %v185
  %v236 = vpack.c.b16 %v188, %v187
  %v237 = vpack.c.b16 %v190, %v189
  %v238 = vpack.c.b16 %v192, %v191
  %v239 = vpack.c.b16 %v194, %v193
  %v240 = vpack.c.b16 %v196, %v195
  %v241 = vpack.c.b16 %v198, %v197
  %v242 = vpack.c.b16 %v200, %v199
  %v243 = vpack.c.b16 %v202, %v201
  %v244 = vpack.c.b16 %v204, %v203
  %v245 = vpack.c.b16 %v206, %v205
  %v246 = vpack.c.b16 %v208, %v207
  %v247 = vpack.c.b16 %v210, %v209
  %v248 = vpack.c.b16 %v212, %v211
  %v249 = vpack.c.b16 %v214, %v213
  %v250 = vpack.c.b16 %v216, %v215
  %v251 = vpack.c.b16 %v218, %v217
  %v252 = vpack.c.b16 %v220, %v219
  %v257 = vunpack.c.l.b16 %v85
  %v258 = vunpack.c.l.b16 %v86
  %v259 = vunpack.c.l.b16 %v87
  %v260 = vunpack.c.l.b16 %v88
  %v261 = vpack.c.b16 %v258, %v257
  %v262 = vpack.c.b16 %v260, %v259
  %vm265 = vcmask 261120
  %v267 = vsel %vm265, %v221, 0
  %v270 = vsel %vm265, %v222, 0
  %v273 = vsel %vm265, %v223, 0
  %v276 = vsel %vm265, %v224, 0
  %v279 = vsel %vm265, %v225, 0
  %v282 = vsel %vm265, %v226, 0
  %v285 = vsel %vm265, %v227, 0
  %v288 = vsel %vm265, %v228, 0
  %v291 = vsel %vm265, %v229, 0
  %v294 = vsel %vm265, %v230, 0
  %v297 = vsel %vm265, %v231, 0
  %v300 = vsel %vm265, %v232, 0
  %v303 = vsel %vm265, %v233, 0
  %v306 = vsel %vm265, %v234, 0
  %v309 = vsel %vm265, %v235, 0
  %v312 = vsel %vm265, %v236, 0
  %v315 = vsel %vm265, %v237, 0
  %v318 = vsel %vm265, %v238, 0
  %v321 = vsel %vm265, %v239, 0
  %v324 = vsel %vm265, %v240, 0
  %v327 = vsel %vm265, %v241, 0
  %v330 = vsel %vm265, %v242, 0
  %v333 = vsel %vm265, %v243, 0
  %v336 = vsel %vm265, %v244, 0
  %v339 = vsel %vm265, %v245, 0
  %v342 = vsel %vm265, %v246, 0
  %v345 = vsel %vm265, %v247, 0
  %v348 = vsel %vm265, %v248, 0
  %v351 = vsel %vm265, %v249, 0
  %v354 = vsel %vm265, %v250, 0
  %v357 = vsel %vm265, %v251, 0
  %v360 = vsel %vm265, %v252, 0
  %362 = vmatpush.bf16.msra.mxu0 0
  %363 = vmatpush.bf16.msra.mxu0 0
  %364 = vmatpush.bf16.msra.mxu0 0
  %365 = vmatpush.bf16.msra.mxu0 0
  %366 = vmatpush.bf16.msra.mxu0 0
  %367 = vmatpush.bf16.msra.mxu0 0
  %368 = vmatpush.bf16.msra.mxu0 %v262
  %369 = vmatpush.bf16.msra.mxu0 %v261
  %370 = vmatmul.bf16.gmra.mxu0 %v267
  %v371 = vpop.f32.mrf.mxu0
  %v372 = vadd.f32 %v91, %v371
  %v373 = vpop.f32.mrf.mxu0
  %v374 = vadd.f32 %v91, %v373
  %375 = vmatmul.bf16.gmra.mxu0 %v270
  %v376 = vpop.f32.mrf.mxu0
  %v377 = vadd.f32 %v91, %v376
  %v378 = vpop.f32.mrf.mxu0
  %v379 = vadd.f32 %v91, %v378
  %380 = vmatmul.bf16.gmra.mxu0 %v273
  %v381 = vpop.f32.mrf.mxu0
  %v382 = vadd.f32 %v91, %v381
  %v383 = vpop.f32.mrf.mxu0
  %v384 = vadd.f32 %v91, %v383
  %385 = vmatmul.bf16.gmra.mxu0 %v276
  %v386 = vpop.f32.mrf.mxu0
  %v387 = vadd.f32 %v91, %v386
  %v388 = vpop.f32.mrf.mxu0
  %v389 = vadd.f32 %v91, %v388
  %390 = vmatmul.bf16.gmra.mxu0 %v279
  %v391 = vpop.f32.mrf.mxu0
  %v392 = vadd.f32 %v91, %v391
  %v393 = vpop.f32.mrf.mxu0
  %v394 = vadd.f32 %v91, %v393
  %395 = vmatmul.bf16.gmra.mxu0 %v282
  %v396 = vpop.f32.mrf.mxu0
  %v397 = vadd.f32 %v91, %v396
  %v398 = vpop.f32.mrf.mxu0
  %v399 = vadd.f32 %v91, %v398
  %400 = vmatmul.bf16.gmra.mxu0 %v285
  %v401 = vpop.f32.mrf.mxu0
  %v402 = vadd.f32 %v91, %v401
  %v403 = vpop.f32.mrf.mxu0
  %v404 = vadd.f32 %v91, %v403
  %405 = vmatmul.bf16.gmra.mxu0 %v288
  %v406 = vpop.f32.mrf.mxu0
  %v407 = vadd.f32 %v91, %v406
  %v408 = vpop.f32.mrf.mxu0
  %v409 = vadd.f32 %v91, %v408
  %410 = vmatmul.bf16.gmra.mxu0 %v291
  %v411 = vpop.f32.mrf.mxu0
  %v412 = vadd.f32 %v91, %v411
  %v413 = vpop.f32.mrf.mxu0
  %v414 = vadd.f32 %v91, %v413
  %415 = vmatmul.bf16.gmra.mxu0 %v294
  %v416 = vpop.f32.mrf.mxu0
  %v417 = vadd.f32 %v91, %v416
  %v418 = vpop.f32.mrf.mxu0
  %v419 = vadd.f32 %v91, %v418
  %420 = vmatmul.bf16.gmra.mxu0 %v297
  %v421 = vpop.f32.mrf.mxu0
  %v422 = vadd.f32 %v91, %v421
  %v423 = vpop.f32.mrf.mxu0
  %v424 = vadd.f32 %v91, %v423
  %425 = vmatmul.bf16.gmra.mxu0 %v300
  %v426 = vpop.f32.mrf.mxu0
  %v427 = vadd.f32 %v91, %v426
  %v428 = vpop.f32.mrf.mxu0
  %v429 = vadd.f32 %v91, %v428
  %430 = vmatmul.bf16.gmra.mxu0 %v303
  %v431 = vpop.f32.mrf.mxu0
  %v432 = vadd.f32 %v91, %v431
  %v433 = vpop.f32.mrf.mxu0
  %v434 = vadd.f32 %v91, %v433
  %435 = vmatmul.bf16.gmra.mxu0 %v306
  %v436 = vpop.f32.mrf.mxu0
  %v437 = vadd.f32 %v91, %v436
  %v438 = vpop.f32.mrf.mxu0
  %v439 = vadd.f32 %v91, %v438
  %440 = vmatmul.bf16.gmra.mxu0 %v309
  %v441 = vpop.f32.mrf.mxu0
  %v442 = vadd.f32 %v91, %v441
  %v443 = vpop.f32.mrf.mxu0
  %v444 = vadd.f32 %v91, %v443
  %445 = vmatmul.bf16.gmra.mxu0 %v312
  %v446 = vpop.f32.mrf.mxu0
  %v447 = vadd.f32 %v91, %v446
  %v448 = vpop.f32.mrf.mxu0
  %v449 = vadd.f32 %v91, %v448
  %450 = vmatmul.bf16.gmra.mxu0 %v315
  %v451 = vpop.f32.mrf.mxu0
  %v452 = vadd.f32 %v91, %v451
  %v453 = vpop.f32.mrf.mxu0
  %v454 = vadd.f32 %v91, %v453
  %455 = vmatmul.bf16.gmra.mxu0 %v318
  %v456 = vpop.f32.mrf.mxu0
  %v457 = vadd.f32 %v91, %v456
  %v458 = vpop.f32.mrf.mxu0
  %v459 = vadd.f32 %v91, %v458
  %460 = vmatmul.bf16.gmra.mxu0 %v321
  %v461 = vpop.f32.mrf.mxu0
  %v462 = vadd.f32 %v91, %v461
  %v463 = vpop.f32.mrf.mxu0
  %v464 = vadd.f32 %v91, %v463
  %465 = vmatmul.bf16.gmra.mxu0 %v324
  %v466 = vpop.f32.mrf.mxu0
  %v467 = vadd.f32 %v91, %v466
  %v468 = vpop.f32.mrf.mxu0
  %v469 = vadd.f32 %v91, %v468
  %470 = vmatmul.bf16.gmra.mxu0 %v327
  %v471 = vpop.f32.mrf.mxu0
  %v472 = vadd.f32 %v91, %v471
  %v473 = vpop.f32.mrf.mxu0
  %v474 = vadd.f32 %v91, %v473
  %475 = vmatmul.bf16.gmra.mxu0 %v330
  %v476 = vpop.f32.mrf.mxu0
  %v477 = vadd.f32 %v91, %v476
  %v478 = vpop.f32.mrf.mxu0
  %v479 = vadd.f32 %v91, %v478
  %480 = vmatmul.bf16.gmra.mxu0 %v333
  %v481 = vpop.f32.mrf.mxu0
  %v482 = vadd.f32 %v91, %v481
  %v483 = vpop.f32.mrf.mxu0
  %v484 = vadd.f32 %v91, %v483
  %485 = vmatmul.bf16.gmra.mxu0 %v336
  %v486 = vpop.f32.mrf.mxu0
  %v487 = vadd.f32 %v91, %v486
  %v488 = vpop.f32.mrf.mxu0
  %v489 = vadd.f32 %v91, %v488
  %490 = vmatmul.bf16.gmra.mxu0 %v339
  %v491 = vpop.f32.mrf.mxu0
  %v492 = vadd.f32 %v91, %v491
  %v493 = vpop.f32.mrf.mxu0
  %v494 = vadd.f32 %v91, %v493
  %495 = vmatmul.bf16.gmra.mxu0 %v342
  %v496 = vpop.f32.mrf.mxu0
  %v497 = vadd.f32 %v91, %v496
  %v498 = vpop.f32.mrf.mxu0
  %v499 = vadd.f32 %v91, %v498
  %500 = vmatmul.bf16.gmra.mxu0 %v345
  %v501 = vpop.f32.mrf.mxu0
  %v502 = vadd.f32 %v91, %v501
  %v503 = vpop.f32.mrf.mxu0
  %v504 = vadd.f32 %v91, %v503
  %505 = vmatmul.bf16.gmra.mxu0 %v348
  %v506 = vpop.f32.mrf.mxu0
  %v507 = vadd.f32 %v91, %v506
  %v508 = vpop.f32.mrf.mxu0
  %v509 = vadd.f32 %v91, %v508
  %510 = vmatmul.bf16.gmra.mxu0 %v351
  %v511 = vpop.f32.mrf.mxu0
  %v512 = vadd.f32 %v91, %v511
  %v513 = vpop.f32.mrf.mxu0
  %v514 = vadd.f32 %v91, %v513
  %515 = vmatmul.bf16.gmra.mxu0 %v354
  %v516 = vpop.f32.mrf.mxu0
  %v517 = vadd.f32 %v91, %v516
  %v518 = vpop.f32.mrf.mxu0
  %v519 = vadd.f32 %v91, %v518
  %520 = vmatmul.bf16.gmra.mxu0 %v357
  %v521 = vpop.f32.mrf.mxu0
  %v522 = vadd.f32 %v91, %v521
  %v523 = vpop.f32.mrf.mxu0
  %v524 = vadd.f32 %v91, %v523
  %525 = vmatmul.bf16.gmra.mxu0 %v360
  %v526 = vpop.f32.mrf.mxu0
  %v527 = vadd.f32 %v91, %v526
  %v528 = vpop.f32.mrf.mxu0
  %v529 = vadd.f32 %v91, %v528
  %530 = vdwg.mxu0
  %v531 = vmax.f32 %v372, 0.0
  %v532 = vmax.f32 %v374, 0.0
  %v533 = vmax.f32 %v377, 0.0
  %v534 = vmax.f32 %v379, 0.0
  %v535 = vmax.f32 %v382, 0.0
  %v536 = vmax.f32 %v384, 0.0
  %v537 = vmax.f32 %v387, 0.0
  %v538 = vmax.f32 %v389, 0.0
  %v539 = vmax.f32 %v392, 0.0
  %v540 = vmax.f32 %v394, 0.0
  %v541 = vmax.f32 %v397, 0.0
  %v542 = vmax.f32 %v399, 0.0
  %v543 = vmax.f32 %v402, 0.0
  %v544 = vmax.f32 %v404, 0.0
  %v545 = vmax.f32 %v407, 0.0
  %v546 = vmax.f32 %v409, 0.0
  %v547 = vmax.f32 %v412, 0.0
  %v548 = vmax.f32 %v414, 0.0
  %v549 = vmax.f32 %v417, 0.0
  %v550 = vmax.f32 %v419, 0.0
  %v551 = vmax.f32 %v422, 0.0
  %v552 = vmax.f32 %v424, 0.0
  %v553 = vmax.f32 %v427, 0.0
  %v554 = vmax.f32 %v429, 0.0
  %v555 = vmax.f32 %v432, 0.0
  %v556 = vmax.f32 %v434, 0.0
  %v557 = vmax.f32 %v437, 0.0
  %v558 = vmax.f32 %v439, 0.0
  %v559 = vmax.f32 %v442, 0.0
  %v560 = vmax.f32 %v444, 0.0
  %v561 = vmax.f32 %v447, 0.0
  %v562 = vmax.f32 %v449, 0.0
  %v563 = vmax.f32 %v452, 0.0
  %v564 = vmax.f32 %v454, 0.0
  %v565 = vmax.f32 %v457, 0.0
  %v566 = vmax.f32 %v459, 0.0
  %v567 = vmax.f32 %v462, 0.0
  %v568 = vmax.f32 %v464, 0.0
  %v569 = vmax.f32 %v467, 0.0
  %v570 = vmax.f32 %v469, 0.0
  %v571 = vmax.f32 %v472, 0.0
  %v572 = vmax.f32 %v474, 0.0
  %v573 = vmax.f32 %v477, 0.0
  %v574 = vmax.f32 %v479, 0.0
  %v575 = vmax.f32 %v482, 0.0
  %v576 = vmax.f32 %v484, 0.0
  %v577 = vmax.f32 %v487, 0.0
  %v578 = vmax.f32 %v489, 0.0
  %v579 = vmax.f32 %v492, 0.0
  %v580 = vmax.f32 %v494, 0.0
  %v581 = vmax.f32 %v497, 0.0
  %v582 = vmax.f32 %v499, 0.0
  %v583 = vmax.f32 %v502, 0.0
  %v584 = vmax.f32 %v504, 0.0
  %v585 = vmax.f32 %v507, 0.0
  %v586 = vmax.f32 %v509, 0.0
  %v587 = vmax.f32 %v512, 0.0
  %v588 = vmax.f32 %v514, 0.0
  %v589 = vmax.f32 %v517, 0.0
  %v590 = vmax.f32 %v519, 0.0
  %v591 = vmax.f32 %v522, 0.0
  %v592 = vmax.f32 %v524, 0.0
  %v593 = vmax.f32 %v527, 0.0
  %v594 = vmax.f32 %v529, 0.0
  %v595 = vpack.c.bf16 %v532, %v531
  %v596 = vpack.c.bf16 %v534, %v533
  %v597 = vpack.c.bf16 %v536, %v535
  %v598 = vpack.c.bf16 %v538, %v537
  %v599 = vpack.c.bf16 %v540, %v539
  %v600 = vpack.c.bf16 %v542, %v541
  %v601 = vpack.c.bf16 %v544, %v543
  %v602 = vpack.c.bf16 %v546, %v545
  %v603 = vpack.c.bf16 %v548, %v547
  %v604 = vpack.c.bf16 %v550, %v549
  %v605 = vpack.c.bf16 %v552, %v551
  %v606 = vpack.c.bf16 %v554, %v553
  %v607 = vpack.c.bf16 %v556, %v555
  %v608 = vpack.c.bf16 %v558, %v557
  %v609 = vpack.c.bf16 %v560, %v559
  %v610 = vpack.c.bf16 %v562, %v561
  %v611 = vpack.c.bf16 %v564, %v563
  %v612 = vpack.c.bf16 %v566, %v565
  %v613 = vpack.c.bf16 %v568, %v567
  %v614 = vpack.c.bf16 %v570, %v569
  %v615 = vpack.c.bf16 %v572, %v571
  %v616 = vpack.c.bf16 %v574, %v573
  %v617 = vpack.c.bf16 %v576, %v575
  %v618 = vpack.c.bf16 %v578, %v577
  %v619 = vpack.c.bf16 %v580, %v579
  %v620 = vpack.c.bf16 %v582, %v581
  %v621 = vpack.c.bf16 %v584, %v583
  %v622 = vpack.c.bf16 %v586, %v585
  %v623 = vpack.c.bf16 %v588, %v587
  %v624 = vpack.c.bf16 %v590, %v589
  %v625 = vpack.c.bf16 %v592, %v591
  %v626 = vpack.c.bf16 %v594, %v593
  %v627 = vld [vmem:[%s3] sm:$0xf]
  %v628 = vld [vmem:[%s3 + $0x4] sm:$0xf]
  %v629 = vld [vmem:[%s3 + $0x8] sm:$0xf]
  %v630 = vld [vmem:[%s3 + $0xc] sm:$0xf]
  %v631 = vld [vmem:[%s4] sm:$0x1]
  %v633 = vperm.slane %v631, 0
  %v639 = vunpack.c.l.b16 %v627
  %v640 = vunpack.c.l.b16 %v628
  %v641 = vunpack.c.l.b16 %v629
  %v642 = vunpack.c.l.b16 %v630
  %v643 = vpack.c.b16 %v640, %v639
  %v644 = vpack.c.b16 %v642, %v641
  %v648 = vsel %vm265, %v595, 0
  %v651 = vsel %vm265, %v596, 0
  %v654 = vsel %vm265, %v597, 0
  %v657 = vsel %vm265, %v598, 0
  %v660 = vsel %vm265, %v599, 0
  %v663 = vsel %vm265, %v600, 0
  %v666 = vsel %vm265, %v601, 0
  %v669 = vsel %vm265, %v602, 0
  %v672 = vsel %vm265, %v603, 0
  %v675 = vsel %vm265, %v604, 0
  %v678 = vsel %vm265, %v605, 0
  %v681 = vsel %vm265, %v606, 0
  %v684 = vsel %vm265, %v607, 0
  %v687 = vsel %vm265, %v608, 0
  %v690 = vsel %vm265, %v609, 0
  %v693 = vsel %vm265, %v610, 0
  %v696 = vsel %vm265, %v611, 0
  %v699 = vsel %vm265, %v612, 0
  %v702 = vsel %vm265, %v613, 0
  %v705 = vsel %vm265, %v614, 0
  %v708 = vsel %vm265, %v615, 0
  %v711 = vsel %vm265, %v616, 0
  %v714 = vsel %vm265, %v617, 0
  %v717 = vsel %vm265, %v618, 0
  %v720 = vsel %vm265, %v619, 0
  %v723 = vsel %vm265, %v620, 0
  %v726 = vsel %vm265, %v621, 0
  %v729 = vsel %vm265, %v622, 0
  %v732 = vsel %vm265, %v623, 0
  %v735 = vsel %vm265, %v624, 0
  %v738 = vsel %vm265, %v625, 0
  %v741 = vsel %vm265, %v626, 0
  %743 = vmatpush.bf16.msra.mxu0 0
  %744 = vmatpush.bf16.msra.mxu0 0
  %745 = vmatpush.bf16.msra.mxu0 0
  %746 = vmatpush.bf16.msra.mxu0 0
  %747 = vmatpush.bf16.msra.mxu0 0
  %748 = vmatpush.bf16.msra.mxu0 0
  %749 = vmatpush.bf16.msra.mxu0 %v644
  %750 = vmatpush.bf16.msra.mxu0 %v643
  %751 = vmatmul.bf16.gmra.mxu0 %v648
  %v752 = vpop.f32.mrf.mxu0
  %v753 = vadd.f32 %v633, %v752
  %v754 = vpop.f32.mrf.mxu0
  %v755 = vadd.f32 %v633, %v754
  %756 = vmatmul.bf16.gmra.mxu0 %v651
  %v757 = vpop.f32.mrf.mxu0
  %v758 = vadd.f32 %v633, %v757
  %v759 = vpop.f32.mrf.mxu0
  %v760 = vadd.f32 %v633, %v759
  %761 = vmatmul.bf16.gmra.mxu0 %v654
  %v762 = vpop.f32.mrf.mxu0
  %v763 = vadd.f32 %v633, %v762
  %v764 = vpop.f32.mrf.mxu0
  %v765 = vadd.f32 %v633, %v764
  %766 = vmatmul.bf16.gmra.mxu0 %v657
  %v767 = vpop.f32.mrf.mxu0
  %v768 = vadd.f32 %v633, %v767
  %v769 = vpop.f32.mrf.mxu0
  %v770 = vadd.f32 %v633, %v769
  %771 = vmatmul.bf16.gmra.mxu0 %v660
  %v772 = vpop.f32.mrf.mxu0
  %v773 = vadd.f32 %v633, %v772
  %v774 = vpop.f32.mrf.mxu0
  %v775 = vadd.f32 %v633, %v774
  %776 = vmatmul.bf16.gmra.mxu0 %v663
  %v777 = vpop.f32.mrf.mxu0
  %v778 = vadd.f32 %v633, %v777
  %v779 = vpop.f32.mrf.mxu0
  %v780 = vadd.f32 %v633, %v779
  %781 = vmatmul.bf16.gmra.mxu0 %v666
  %v782 = vpop.f32.mrf.mxu0
  %v783 = vadd.f32 %v633, %v782
  %v784 = vpop.f32.mrf.mxu0
  %v785 = vadd.f32 %v633, %v784
  %786 = vmatmul.bf16.gmra.mxu0 %v669
  %v787 = vpop.f32.mrf.mxu0
  %v788 = vadd.f32 %v633, %v787
  %v789 = vpop.f32.mrf.mxu0
  %v790 = vadd.f32 %v633, %v789
  %791 = vmatmul.bf16.gmra.mxu0 %v672
  %v792 = vpop.f32.mrf.mxu0
  %v793 = vadd.f32 %v633, %v792
  %v794 = vpop.f32.mrf.mxu0
  %v795 = vadd.f32 %v633, %v794
  %796 = vmatmul.bf16.gmra.mxu0 %v675
  %v797 = vpop.f32.mrf.mxu0
  %v798 = vadd.f32 %v633, %v797
  %v799 = vpop.f32.mrf.mxu0
  %v800 = vadd.f32 %v633, %v799
  %801 = vmatmul.bf16.gmra.mxu0 %v678
  %v802 = vpop.f32.mrf.mxu0
  %v803 = vadd.f32 %v633, %v802
  %v804 = vpop.f32.mrf.mxu0
  %v805 = vadd.f32 %v633, %v804
  %806 = vmatmul.bf16.gmra.mxu0 %v681
  %v807 = vpop.f32.mrf.mxu0
  %v808 = vadd.f32 %v633, %v807
  %v809 = vpop.f32.mrf.mxu0
  %v810 = vadd.f32 %v633, %v809
  %811 = vmatmul.bf16.gmra.mxu0 %v684
  %v812 = vpop.f32.mrf.mxu0
  %v813 = vadd.f32 %v633, %v812
  %v814 = vpop.f32.mrf.mxu0
  %v815 = vadd.f32 %v633, %v814
  %816 = vmatmul.bf16.gmra.mxu0 %v687
  %v817 = vpop.f32.mrf.mxu0
  %v818 = vadd.f32 %v633, %v817
  %v819 = vpop.f32.mrf.mxu0
  %v820 = vadd.f32 %v633, %v819
  %821 = vmatmul.bf16.gmra.mxu0 %v690
  %v822 = vpop.f32.mrf.mxu0
  %v823 = vadd.f32 %v633, %v822
  %v824 = vpop.f32.mrf.mxu0
  %v825 = vadd.f32 %v633, %v824
  %826 = vmatmul.bf16.gmra.mxu0 %v693
  %v827 = vpop.f32.mrf.mxu0
  %v828 = vadd.f32 %v633, %v827
  %v829 = vpop.f32.mrf.mxu0
  %v830 = vadd.f32 %v633, %v829
  %831 = vmatmul.bf16.gmra.mxu0 %v696
  %v832 = vpop.f32.mrf.mxu0
  %v833 = vadd.f32 %v633, %v832
  %v834 = vpop.f32.mrf.mxu0
  %v835 = vadd.f32 %v633, %v834
  %836 = vmatmul.bf16.gmra.mxu0 %v699
  %v837 = vpop.f32.mrf.mxu0
  %v838 = vadd.f32 %v633, %v837
  %v839 = vpop.f32.mrf.mxu0
  %v840 = vadd.f32 %v633, %v839
  %841 = vmatmul.bf16.gmra.mxu0 %v702
  %v842 = vpop.f32.mrf.mxu0
  %v843 = vadd.f32 %v633, %v842
  %v844 = vpop.f32.mrf.mxu0
  %v845 = vadd.f32 %v633, %v844
  %846 = vmatmul.bf16.gmra.mxu0 %v705
  %v847 = vpop.f32.mrf.mxu0
  %v848 = vadd.f32 %v633, %v847
  %v849 = vpop.f32.mrf.mxu0
  %v850 = vadd.f32 %v633, %v849
  %851 = vmatmul.bf16.gmra.mxu0 %v708
  %v852 = vpop.f32.mrf.mxu0
  %v853 = vadd.f32 %v633, %v852
  %v854 = vpop.f32.mrf.mxu0
  %v855 = vadd.f32 %v633, %v854
  %856 = vmatmul.bf16.gmra.mxu0 %v711
  %v857 = vpop.f32.mrf.mxu0
  %v858 = vadd.f32 %v633, %v857
  %v859 = vpop.f32.mrf.mxu0
  %v860 = vadd.f32 %v633, %v859
  %861 = vmatmul.bf16.gmra.mxu0 %v714
  %v862 = vpop.f32.mrf.mxu0
  %v863 = vadd.f32 %v633, %v862
  %v864 = vpop.f32.mrf.mxu0
  %v865 = vadd.f32 %v633, %v864
  %866 = vmatmul.bf16.gmra.mxu0 %v717
  %v867 = vpop.f32.mrf.mxu0
  %v868 = vadd.f32 %v633, %v867
  %v869 = vpop.f32.mrf.mxu0
  %v870 = vadd.f32 %v633, %v869
  %871 = vmatmul.bf16.gmra.mxu0 %v720
  %v872 = vpop.f32.mrf.mxu0
  %v873 = vadd.f32 %v633, %v872
  %v874 = vpop.f32.mrf.mxu0
  %v875 = vadd.f32 %v633, %v874
  %876 = vmatmul.bf16.gmra.mxu0 %v723
  %v877 = vpop.f32.mrf.mxu0
  %v878 = vadd.f32 %v633, %v877
  %v879 = vpop.f32.mrf.mxu0
  %v880 = vadd.f32 %v633, %v879
  %881 = vmatmul.bf16.gmra.mxu0 %v726
  %v882 = vpop.f32.mrf.mxu0
  %v883 = vadd.f32 %v633, %v882
  %v884 = vpop.f32.mrf.mxu0
  %v885 = vadd.f32 %v633, %v884
  %886 = vmatmul.bf16.gmra.mxu0 %v729
  %v887 = vpop.f32.mrf.mxu0
  %v888 = vadd.f32 %v633, %v887
  %v889 = vpop.f32.mrf.mxu0
  %v890 = vadd.f32 %v633, %v889
  %891 = vmatmul.bf16.gmra.mxu0 %v732
  %v892 = vpop.f32.mrf.mxu0
  %v893 = vadd.f32 %v633, %v892
  %v894 = vpop.f32.mrf.mxu0
  %v895 = vadd.f32 %v633, %v894
  %896 = vmatmul.bf16.gmra.mxu0 %v735
  %v897 = vpop.f32.mrf.mxu0
  %v898 = vadd.f32 %v633, %v897
  %v899 = vpop.f32.mrf.mxu0
  %v900 = vadd.f32 %v633, %v899
  %901 = vmatmul.bf16.gmra.mxu0 %v738
  %v902 = vpop.f32.mrf.mxu0
  %v903 = vadd.f32 %v633, %v902
  %v904 = vpop.f32.mrf.mxu0
  %v905 = vadd.f32 %v633, %v904
  %906 = vmatmul.bf16.gmra.mxu0 %v741
  %v907 = vpop.f32.mrf.mxu0
  %v908 = vadd.f32 %v633, %v907
  %v909 = vpop.f32.mrf.mxu0
  %v910 = vadd.f32 %v633, %v909
  %911 = vdwg.mxu0
  %v912 = vlaneseq
  %v913 = vand.u32 %v912, 127
  %v914 = vtanh.pop %v753
  %v915 = vtanh.pop %v755
  %v916 = vtanh.pop %v758
  %v917 = vtanh.pop %v760
  %v918 = vtanh.pop %v763
  %v919 = vtanh.pop %v765
  %v920 = vtanh.pop %v768
  %v921 = vtanh.pop %v770
  %v922 = vtanh.pop %v773
  %v923 = vtanh.pop %v775
  %v924 = vtanh.pop %v778
  %v925 = vtanh.pop %v780
  %v926 = vtanh.pop %v783
  %v927 = vtanh.pop %v785
  %v928 = vtanh.pop %v788
  %v929 = vtanh.pop %v790
  %v930 = vtanh.pop %v793
  %v931 = vtanh.pop %v795
  %v932 = vtanh.pop %v798
  %v933 = vtanh.pop %v800
  %v934 = vtanh.pop %v803
  %v935 = vtanh.pop %v805
  %v936 = vtanh.pop %v808
  %v937 = vtanh.pop %v810
  %v938 = vtanh.pop %v813
  %v939 = vtanh.pop %v815
  %v940 = vtanh.pop %v818
  %v941 = vtanh.pop %v820
  %v942 = vtanh.pop %v823
  %v943 = vtanh.pop %v825
  %v944 = vtanh.pop %v828
  %v945 = vtanh.pop %v830
  %v946 = vtanh.pop %v833
  %v947 = vtanh.pop %v835
  %v948 = vtanh.pop %v838
  %v949 = vtanh.pop %v840
  %v950 = vtanh.pop %v843
  %v951 = vtanh.pop %v845
  %v952 = vtanh.pop %v848
  %v953 = vtanh.pop %v850
  %v954 = vtanh.pop %v853
  %v955 = vtanh.pop %v855
  %v956 = vtanh.pop %v858
  %v957 = vtanh.pop %v860
  %v958 = vtanh.pop %v863
  %v959 = vtanh.pop %v865
  %v960 = vtanh.pop %v868
  %v961 = vtanh.pop %v870
  %v962 = vtanh.pop %v873
  %v963 = vtanh.pop %v875
  %v964 = vtanh.pop %v878
  %v965 = vtanh.pop %v880
  %v966 = vtanh.pop %v883
  %v967 = vtanh.pop %v885
  %v968 = vtanh.pop %v888
  %v969 = vtanh.pop %v890
  %v970 = vtanh.pop %v893
  %v971 = vtanh.pop %v895
  %v972 = vtanh.pop %v898
  %v973 = vtanh.pop %v900
  %v974 = vtanh.pop %v903
  %v975 = vtanh.pop %v905
  %v976 = vtanh.pop %v908
  %v977 = vtanh.pop %v910
  %v978 = vmax.f32 %v753, 0.0
  %v979 = vmax.f32 %v755, 0.0
  %v980 = vmax.f32 %v758, 0.0
  %v981 = vmax.f32 %v760, 0.0
  %v982 = vmax.f32 %v763, 0.0
  %v983 = vmax.f32 %v765, 0.0
  %v984 = vmax.f32 %v768, 0.0
  %v985 = vmax.f32 %v770, 0.0
  %v986 = vmax.f32 %v773, 0.0
  %v987 = vmax.f32 %v775, 0.0
  %v988 = vmax.f32 %v778, 0.0
  %v989 = vmax.f32 %v780, 0.0
  %v990 = vmax.f32 %v783, 0.0
  %v991 = vmax.f32 %v785, 0.0
  %v992 = vmax.f32 %v788, 0.0
  %v993 = vmax.f32 %v790, 0.0
  %v994 = vmax.f32 %v793, 0.0
  %v995 = vmax.f32 %v795, 0.0
  %v996 = vmax.f32 %v798, 0.0
  %v997 = vmax.f32 %v800, 0.0
  %v998 = vmax.f32 %v803, 0.0
  %v999 = vmax.f32 %v805, 0.0
  %v1000 = vmax.f32 %v808, 0.0
  %v1001 = vmax.f32 %v810, 0.0
  %v1002 = vmax.f32 %v813, 0.0
  %v1003 = vmax.f32 %v815, 0.0
  %v1004 = vmax.f32 %v818, 0.0
  %v1005 = vmax.f32 %v820, 0.0
  %v1006 = vmax.f32 %v823, 0.0
  %v1007 = vmax.f32 %v825, 0.0
  %v1008 = vmax.f32 %v828, 0.0
  %v1009 = vmax.f32 %v830, 0.0
  %v1010 = vmax.f32 %v833, 0.0
  %v1011 = vmax.f32 %v835, 0.0
  %v1012 = vmax.f32 %v838, 0.0
  %v1013 = vmax.f32 %v840, 0.0
  %v1014 = vmax.f32 %v843, 0.0
  %v1015 = vmax.f32 %v845, 0.0
  %v1016 = vmax.f32 %v848, 0.0
  %v1017 = vmax.f32 %v850, 0.0
  %v1018 = vmax.f32 %v853, 0.0
  %v1019 = vmax.f32 %v855, 0.0
  %v1020 = vmax.f32 %v858, 0.0
  %v1021 = vmax.f32 %v860, 0.0
  %v1022 = vmax.f32 %v863, 0.0
  %v1023 = vmax.f32 %v865, 0.0
  %v1024 = vmax.f32 %v868, 0.0
  %v1025 = vmax.f32 %v870, 0.0
  %v1026 = vmax.f32 %v873, 0.0
  %v1027 = vmax.f32 %v875, 0.0
  %v1028 = vmax.f32 %v878, 0.0
  %v1029 = vmax.f32 %v880, 0.0
  %v1030 = vmax.f32 %v883, 0.0
  %v1031 = vmax.f32 %v885, 0.0
  %v1032 = vmax.f32 %v888, 0.0
  %v1033 = vmax.f32 %v890, 0.0
  %v1034 = vmax.f32 %v893, 0.0
  %v1035 = vmax.f32 %v895, 0.0
  %v1036 = vmax.f32 %v898, 0.0
  %v1037 = vmax.f32 %v900, 0.0
  %v1038 = vmax.f32 %v903, 0.0
  %v1039 = vmax.f32 %v905, 0.0
  %v1040 = vmax.f32 %v908, 0.0
  %v1041 = vmax.f32 %v910, 0.0
  %v1042 = vand.u32 2147483647, %v753
  %v1043 = vand.u32 2147483647, %v755
  %v1044 = vand.u32 2147483647, %v758
  %v1045 = vand.u32 2147483647, %v760
  %v1046 = vand.u32 2147483647, %v763
  %v1047 = vand.u32 2147483647, %v765
  %v1048 = vand.u32 2147483647, %v768
  %v1049 = vand.u32 2147483647, %v770
  %v1050 = vand.u32 2147483647, %v773
  %v1051 = vand.u32 2147483647, %v775
  %v1052 = vand.u32 2147483647, %v778
  %v1053 = vand.u32 2147483647, %v780
  %v1054 = vand.u32 2147483647, %v783
  %v1055 = vand.u32 2147483647, %v785
  %v1056 = vand.u32 2147483647, %v788
  %v1057 = vand.u32 2147483647, %v790
  %v1058 = vand.u32 2147483647, %v793
  %v1059 = vand.u32 2147483647, %v795
  %v1060 = vand.u32 2147483647, %v798
  %v1061 = vand.u32 2147483647, %v800
  %v1062 = vand.u32 2147483647, %v803
  %v1063 = vand.u32 2147483647, %v805
  %v1064 = vand.u32 2147483647, %v808
  %v1065 = vand.u32 2147483647, %v810
  %v1066 = vand.u32 2147483647, %v813
  %v1067 = vand.u32 2147483647, %v815
  %v1068 = vand.u32 2147483647, %v818
  %v1069 = vand.u32 2147483647, %v820
  %v1070 = vand.u32 2147483647, %v823
  %v1071 = vand.u32 2147483647, %v825
  %v1072 = vand.u32 2147483647, %v828
  %v1073 = vand.u32 2147483647, %v830
  %v1074 = vand.u32 2147483647, %v833
  %v1075 = vand.u32 2147483647, %v835
  %v1076 = vand.u32 2147483647, %v838
  %v1077 = vand.u32 2147483647, %v840
  %v1078 = vand.u32 2147483647, %v843
  %v1079 = vand.u32 2147483647, %v845
  %v1080 = vand.u32 2147483647, %v848
  %v1081 = vand.u32 2147483647, %v850
  %v1082 = vand.u32 2147483647, %v853
  %v1083 = vand.u32 2147483647, %v855
  %v1084 = vand.u32 2147483647, %v858
  %v1085 = vand.u32 2147483647, %v860
  %v1086 = vand.u32 2147483647, %v863
  %v1087 = vand.u32 2147483647, %v865
  %v1088 = vand.u32 2147483647, %v868
  %v1089 = vand.u32 2147483647, %v870
  %v1090 = vand.u32 2147483647, %v873
  %v1091 = vand.u32 2147483647, %v875
  %v1092 = vand.u32 2147483647, %v878
  %v1093 = vand.u32 2147483647, %v880
  %v1094 = vand.u32 2147483647, %v883
  %v1095 = vand.u32 2147483647, %v885
  %v1096 = vand.u32 2147483647, %v888
  %v1097 = vand.u32 2147483647, %v890
  %v1098 = vand.u32 2147483647, %v893
  %v1099 = vand.u32 2147483647, %v895
  %v1100 = vand.u32 2147483647, %v898
  %v1101 = vand.u32 2147483647, %v900
  %v1102 = vand.u32 2147483647, %v903
  %v1103 = vand.u32 2147483647, %v905
  %v1104 = vand.u32 2147483647, %v908
  %v1105 = vand.u32 2147483647, %v910
  %v1106 = vsub.f32 0.0, %v1042
  %v1107 = vsub.f32 0.0, %v1043
  %v1108 = vsub.f32 0.0, %v1044
  %v1109 = vsub.f32 0.0, %v1045
  %v1110 = vsub.f32 0.0, %v1046
  %v1111 = vsub.f32 0.0, %v1047
  %v1112 = vsub.f32 0.0, %v1048
  %v1113 = vsub.f32 0.0, %v1049
  %v1114 = vsub.f32 0.0, %v1050
  %v1115 = vsub.f32 0.0, %v1051
  %v1116 = vsub.f32 0.0, %v1052
  %v1117 = vsub.f32 0.0, %v1053
  %v1118 = vsub.f32 0.0, %v1054
  %v1119 = vsub.f32 0.0, %v1055
  %v1120 = vsub.f32 0.0, %v1056
  %v1121 = vsub.f32 0.0, %v1057
  %v1122 = vsub.f32 0.0, %v1058
  %v1123 = vsub.f32 0.0, %v1059
  %v1124 = vsub.f32 0.0, %v1060
  %v1125 = vsub.f32 0.0, %v1061
  %v1126 = vsub.f32 0.0, %v1062
  %v1127 = vsub.f32 0.0, %v1063
  %v1128 = vsub.f32 0.0, %v1064
  %v1129 = vsub.f32 0.0, %v1065
  %v1130 = vsub.f32 0.0, %v1066
  %v1131 = vsub.f32 0.0, %v1067
  %v1132 = vsub.f32 0.0, %v1068
  %v1133 = vsub.f32 0.0, %v1069
  %v1134 = vsub.f32 0.0, %v1070
  %v1135 = vsub.f32 0.0, %v1071
  %v1136 = vsub.f32 0.0, %v1072
  %v1137 = vsub.f32 0.0, %v1073
  %v1138 = vsub.f32 0.0, %v1074
  %v1139 = vsub.f32 0.0, %v1075
  %v1140 = vsub.f32 0.0, %v1076
  %v1141 = vsub.f32 0.0, %v1077
  %v1142 = vsub.f32 0.0, %v1078
  %v1143 = vsub.f32 0.0, %v1079
  %v1144 = vsub.f32 0.0, %v1080
  %v1145 = vsub.f32 0.0, %v1081
  %v1146 = vsub.f32 0.0, %v1082
  %v1147 = vsub.f32 0.0, %v1083
  %v1148 = vsub.f32 0.0, %v1084
  %v1149 = vsub.f32 0.0, %v1085
  %v1150 = vsub.f32 0.0, %v1086
  %v1151 = vsub.f32 0.0, %v1087
  %v1152 = vsub.f32 0.0, %v1088
  %v1153 = vsub.f32 0.0, %v1089
  %v1154 = vsub.f32 0.0, %v1090
  %v1155 = vsub.f32 0.0, %v1091
  %v1156 = vsub.f32 0.0, %v1092
  %v1157 = vsub.f32 0.0, %v1093
  %v1158 = vsub.f32 0.0, %v1094
  %v1159 = vsub.f32 0.0, %v1095
  %v1160 = vsub.f32 0.0, %v1096
  %v1161 = vsub.f32 0.0, %v1097
  %v1162 = vsub.f32 0.0, %v1098
  %v1163 = vsub.f32 0.0, %v1099
  %v1164 = vsub.f32 0.0, %v1100
  %v1165 = vsub.f32 0.0, %v1101
  %v1166 = vsub.f32 0.0, %v1102
  %v1167 = vsub.f32 0.0, %v1103
  %v1168 = vsub.f32 0.0, %v1104
  %v1169 = vsub.f32 0.0, %v1105
  %v1170 = vmul.f32 %v1106, 1.442695
  %v1171 = vpow.pop %v1170
  %v1172 = vmul.f32 %v1107, 1.442695
  %v1173 = vpow.pop %v1172
  %v1174 = vmul.f32 %v1108, 1.442695
  %v1175 = vpow.pop %v1174
  %v1176 = vmul.f32 %v1109, 1.442695
  %v1177 = vpow.pop %v1176
  %v1178 = vmul.f32 %v1110, 1.442695
  %v1179 = vpow.pop %v1178
  %v1180 = vmul.f32 %v1111, 1.442695
  %v1181 = vpow.pop %v1180
  %v1182 = vmul.f32 %v1112, 1.442695
  %v1183 = vpow.pop %v1182
  %v1184 = vmul.f32 %v1113, 1.442695
  %v1185 = vpow.pop %v1184
  %v1186 = vmul.f32 %v1114, 1.442695
  %v1187 = vpow.pop %v1186
  %v1188 = vmul.f32 %v1115, 1.442695
  %v1189 = vpow.pop %v1188
  %v1190 = vmul.f32 %v1116, 1.442695
  %v1191 = vpow.pop %v1190
  %v1192 = vmul.f32 %v1117, 1.442695
  %v1193 = vpow.pop %v1192
  %v1194 = vmul.f32 %v1118, 1.442695
  %v1195 = vpow.pop %v1194
  %v1196 = vmul.f32 %v1119, 1.442695
  %v1197 = vpow.pop %v1196
  %v1198 = vmul.f32 %v1120, 1.442695
  %v1199 = vpow.pop %v1198
  %v1200 = vmul.f32 %v1121, 1.442695
  %v1201 = vpow.pop %v1200
  %v1202 = vmul.f32 %v1122, 1.442695
  %v1203 = vpow.pop %v1202
  %v1204 = vmul.f32 %v1123, 1.442695
  %v1205 = vpow.pop %v1204
  %v1206 = vmul.f32 %v1124, 1.442695
  %v1207 = vpow.pop %v1206
  %v1208 = vmul.f32 %v1125, 1.442695
  %v1209 = vpow.pop %v1208
  %v1210 = vmul.f32 %v1126, 1.442695
  %v1211 = vpow.pop %v1210
  %v1212 = vmul.f32 %v1127, 1.442695
  %v1213 = vpow.pop %v1212
  %v1214 = vmul.f32 %v1128, 1.442695
  %v1215 = vpow.pop %v1214
  %v1216 = vmul.f32 %v1129, 1.442695
  %v1217 = vpow.pop %v1216
  %v1218 = vmul.f32 %v1130, 1.442695
  %v1219 = vpow.pop %v1218
  %v1220 = vmul.f32 %v1131, 1.442695
  %v1221 = vpow.pop %v1220
  %v1222 = vmul.f32 %v1132, 1.442695
  %v1223 = vpow.pop %v1222
  %v1224 = vmul.f32 %v1133, 1.442695
  %v1225 = vpow.pop %v1224
  %v1226 = vmul.f32 %v1134, 1.442695
  %v1227 = vpow.pop %v1226
  %v1228 = vmul.f32 %v1135, 1.442695
  %v1229 = vpow.pop %v1228
  %v1230 = vmul.f32 %v1136, 1.442695
  %v1231 = vpow.pop %v1230
  %v1232 = vmul.f32 %v1137, 1.442695
  %v1233 = vpow.pop %v1232
  %v1234 = vmul.f32 %v1138, 1.442695
  %v1235 = vpow.pop %v1234
  %v1236 = vmul.f32 %v1139, 1.442695
  %v1237 = vpow.pop %v1236
  %v1238 = vmul.f32 %v1140, 1.442695
  %v1239 = vpow.pop %v1238
  %v1240 = vmul.f32 %v1141, 1.442695
  %v1241 = vpow.pop %v1240
  %v1242 = vmul.f32 %v1142, 1.442695
  %v1243 = vpow.pop %v1242
  %v1244 = vmul.f32 %v1143, 1.442695
  %v1245 = vpow.pop %v1244
  %v1246 = vmul.f32 %v1144, 1.442695
  %v1247 = vpow.pop %v1246
  %v1248 = vmul.f32 %v1145, 1.442695
  %v1249 = vpow.pop %v1248
  %v1250 = vmul.f32 %v1146, 1.442695
  %v1251 = vpow.pop %v1250
  %v1252 = vmul.f32 %v1147, 1.442695
  %v1253 = vpow.pop %v1252
  %v1254 = vmul.f32 %v1148, 1.442695
  %v1255 = vpow.pop %v1254
  %v1256 = vmul.f32 %v1149, 1.442695
  %v1257 = vpow.pop %v1256
  %v1258 = vmul.f32 %v1150, 1.442695
  %v1259 = vpow.pop %v1258
  %v1260 = vmul.f32 %v1151, 1.442695
  %v1261 = vpow.pop %v1260
  %v1262 = vmul.f32 %v1152, 1.442695
  %v1263 = vpow.pop %v1262
  %v1264 = vmul.f32 %v1153, 1.442695
  %v1265 = vpow.pop %v1264
  %v1266 = vmul.f32 %v1154, 1.442695
  %v1267 = vpow.pop %v1266
  %v1268 = vmul.f32 %v1155, 1.442695
  %v1269 = vpow.pop %v1268
  %v1270 = vmul.f32 %v1156, 1.442695
  %v1271 = vpow.pop %v1270
  %v1272 = vmul.f32 %v1157, 1.442695
  %v1273 = vpow.pop %v1272
  %v1274 = vmul.f32 %v1158, 1.442695
  %v1275 = vpow.pop %v1274
  %v1276 = vmul.f32 %v1159, 1.442695
  %v1277 = vpow.pop %v1276
  %v1278 = vmul.f32 %v1160, 1.442695
  %v1279 = vpow.pop %v1278
  %v1280 = vmul.f32 %v1161, 1.442695
  %v1281 = vpow.pop %v1280
  %v1282 = vmul.f32 %v1162, 1.442695
  %v1283 = vpow.pop %v1282
  %v1284 = vmul.f32 %v1163, 1.442695
  %v1285 = vpow.pop %v1284
  %v1286 = vmul.f32 %v1164, 1.442695
  %v1287 = vpow.pop %v1286
  %v1288 = vmul.f32 %v1165, 1.442695
  %v1289 = vpow.pop %v1288
  %v1290 = vmul.f32 %v1166, 1.442695
  %v1291 = vpow.pop %v1290
  %v1292 = vmul.f32 %v1167, 1.442695
  %v1293 = vpow.pop %v1292
  %v1294 = vmul.f32 %v1168, 1.442695
  %v1295 = vpow.pop %v1294
  %v1296 = vmul.f32 %v1169, 1.442695
  %v1297 = vpow.pop %v1296
  %v1298 = vadd.f32 %v1171, 1.0
  %v1299 = vadd.f32 %v1173, 1.0
  %v1300 = vadd.f32 %v1175, 1.0
  %v1301 = vadd.f32 %v1177, 1.0
  %v1302 = vadd.f32 %v1179, 1.0
  %v1303 = vadd.f32 %v1181, 1.0
  %v1304 = vadd.f32 %v1183, 1.0
  %v1305 = vadd.f32 %v1185, 1.0
  %v1306 = vadd.f32 %v1187, 1.0
  %v1307 = vadd.f32 %v1189, 1.0
  %v1308 = vadd.f32 %v1191, 1.0
  %v1309 = vadd.f32 %v1193, 1.0
  %v1310 = vadd.f32 %v1195, 1.0
  %v1311 = vadd.f32 %v1197, 1.0
  %v1312 = vadd.f32 %v1199, 1.0
  %v1313 = vadd.f32 %v1201, 1.0
  %v1314 = vadd.f32 %v1203, 1.0
  %v1315 = vadd.f32 %v1205, 1.0
  %v1316 = vadd.f32 %v1207, 1.0
  %v1317 = vadd.f32 %v1209, 1.0
  %v1318 = vadd.f32 %v1211, 1.0
  %v1319 = vadd.f32 %v1213, 1.0
  %v1320 = vadd.f32 %v1215, 1.0
  %v1321 = vadd.f32 %v1217, 1.0
  %v1322 = vadd.f32 %v1219, 1.0
  %v1323 = vadd.f32 %v1221, 1.0
  %v1324 = vadd.f32 %v1223, 1.0
  %v1325 = vadd.f32 %v1225, 1.0
  %v1326 = vadd.f32 %v1227, 1.0
  %v1327 = vadd.f32 %v1229, 1.0
  %v1328 = vadd.f32 %v1231, 1.0
  %v1329 = vadd.f32 %v1233, 1.0
  %v1330 = vadd.f32 %v1235, 1.0
  %v1331 = vadd.f32 %v1237, 1.0
  %v1332 = vadd.f32 %v1239, 1.0
  %v1333 = vadd.f32 %v1241, 1.0
  %v1334 = vadd.f32 %v1243, 1.0
  %v1335 = vadd.f32 %v1245, 1.0
  %v1336 = vadd.f32 %v1247, 1.0
  %v1337 = vadd.f32 %v1249, 1.0
  %v1338 = vadd.f32 %v1251, 1.0
  %v1339 = vadd.f32 %v1253, 1.0
  %v1340 = vadd.f32 %v1255, 1.0
  %v1341 = vadd.f32 %v1257, 1.0
  %v1342 = vadd.f32 %v1259, 1.0
  %v1343 = vadd.f32 %v1261, 1.0
  %v1344 = vadd.f32 %v1263, 1.0
  %v1345 = vadd.f32 %v1265, 1.0
  %v1346 = vadd.f32 %v1267, 1.0
  %v1347 = vadd.f32 %v1269, 1.0
  %v1348 = vadd.f32 %v1271, 1.0
  %v1349 = vadd.f32 %v1273, 1.0
  %v1350 = vadd.f32 %v1275, 1.0
  %v1351 = vadd.f32 %v1277, 1.0
  %v1352 = vadd.f32 %v1279, 1.0
  %v1353 = vadd.f32 %v1281, 1.0
  %v1354 = vadd.f32 %v1283, 1.0
  %v1355 = vadd.f32 %v1285, 1.0
  %v1356 = vadd.f32 %v1287, 1.0
  %v1357 = vadd.f32 %v1289, 1.0
  %v1358 = vadd.f32 %v1291, 1.0
  %v1359 = vadd.f32 %v1293, 1.0
  %v1360 = vadd.f32 %v1295, 1.0
  %v1361 = vadd.f32 %v1297, 1.0
  %v1362 = vlog2.pop %v1298
  %v1363 = vmul.f32 %v1362, 0.6931472
  %v1364 = vlog2.pop %v1299
  %v1365 = vmul.f32 %v1364, 0.6931472
  %v1366 = vlog2.pop %v1300
  %v1367 = vmul.f32 %v1366, 0.6931472
  %v1368 = vlog2.pop %v1301
  %v1369 = vmul.f32 %v1368, 0.6931472
  %v1370 = vlog2.pop %v1302
  %v1371 = vmul.f32 %v1370, 0.6931472
  %v1372 = vlog2.pop %v1303
  %v1373 = vmul.f32 %v1372, 0.6931472
  %v1374 = vlog2.pop %v1304
  %v1375 = vmul.f32 %v1374, 0.6931472
  %v1376 = vlog2.pop %v1305
  %v1377 = vmul.f32 %v1376, 0.6931472
  %v1378 = vlog2.pop %v1306
  %v1379 = vmul.f32 %v1378, 0.6931472
  %v1380 = vlog2.pop %v1307
  %v1381 = vmul.f32 %v1380, 0.6931472
  %v1382 = vlog2.pop %v1308
  %v1383 = vmul.f32 %v1382, 0.6931472
  %v1384 = vlog2.pop %v1309
  %v1385 = vmul.f32 %v1384, 0.6931472
  %v1386 = vlog2.pop %v1310
  %v1387 = vmul.f32 %v1386, 0.6931472
  %v1388 = vlog2.pop %v1311
  %v1389 = vmul.f32 %v1388, 0.6931472
  %v1390 = vlog2.pop %v1312
  %v1391 = vmul.f32 %v1390, 0.6931472
  %v1392 = vlog2.pop %v1313
  %v1393 = vmul.f32 %v1392, 0.6931472
  %v1394 = vlog2.pop %v1314
  %v1395 = vmul.f32 %v1394, 0.6931472
  %v1396 = vlog2.pop %v1315
  %v1397 = vmul.f32 %v1396, 0.6931472
  %v1398 = vlog2.pop %v1316
  %v1399 = vmul.f32 %v1398, 0.6931472
  %v1400 = vlog2.pop %v1317
  %v1401 = vmul.f32 %v1400, 0.6931472
  %v1402 = vlog2.pop %v1318
  %v1403 = vmul.f32 %v1402, 0.6931472
  %v1404 = vlog2.pop %v1319
  %v1405 = vmul.f32 %v1404, 0.6931472
  %v1406 = vlog2.pop %v1320
  %v1407 = vmul.f32 %v1406, 0.6931472
  %v1408 = vlog2.pop %v1321
  %v1409 = vmul.f32 %v1408, 0.6931472
  %v1410 = vlog2.pop %v1322
  %v1411 = vmul.f32 %v1410, 0.6931472
  %v1412 = vlog2.pop %v1323
  %v1413 = vmul.f32 %v1412, 0.6931472
  %v1414 = vlog2.pop %v1324
  %v1415 = vmul.f32 %v1414, 0.6931472
  %v1416 = vlog2.pop %v1325
  %v1417 = vmul.f32 %v1416, 0.6931472
  %v1418 = vlog2.pop %v1326
  %v1419 = vmul.f32 %v1418, 0.6931472
  %v1420 = vlog2.pop %v1327
  %v1421 = vmul.f32 %v1420, 0.6931472
  %v1422 = vlog2.pop %v1328
  %v1423 = vmul.f32 %v1422, 0.6931472
  %v1424 = vlog2.pop %v1329
  %v1425 = vmul.f32 %v1424, 0.6931472
  %v1426 = vlog2.pop %v1330
  %v1427 = vmul.f32 %v1426, 0.6931472
  %v1428 = vlog2.pop %v1331
  %v1429 = vmul.f32 %v1428, 0.6931472
  %v1430 = vlog2.pop %v1332
  %v1431 = vmul.f32 %v1430, 0.6931472
  %v1432 = vlog2.pop %v1333
  %v1433 = vmul.f32 %v1432, 0.6931472
  %v1434 = vlog2.pop %v1334
  %v1435 = vmul.f32 %v1434, 0.6931472
  %v1436 = vlog2.pop %v1335
  %v1437 = vmul.f32 %v1436, 0.6931472
  %v1438 = vlog2.pop %v1336
  %v1439 = vmul.f32 %v1438, 0.6931472
  %v1440 = vlog2.pop %v1337
  %v1441 = vmul.f32 %v1440, 0.6931472
  %v1442 = vlog2.pop %v1338
  %v1443 = vmul.f32 %v1442, 0.6931472
  %v1444 = vlog2.pop %v1339
  %v1445 = vmul.f32 %v1444, 0.6931472
  %v1446 = vlog2.pop %v1340
  %v1447 = vmul.f32 %v1446, 0.6931472
  %v1448 = vlog2.pop %v1341
  %v1449 = vmul.f32 %v1448, 0.6931472
  %v1450 = vlog2.pop %v1342
  %v1451 = vmul.f32 %v1450, 0.6931472
  %v1452 = vlog2.pop %v1343
  %v1453 = vmul.f32 %v1452, 0.6931472
  %v1454 = vlog2.pop %v1344
  %v1455 = vmul.f32 %v1454, 0.6931472
  %v1456 = vlog2.pop %v1345
  %v1457 = vmul.f32 %v1456, 0.6931472
  %v1458 = vlog2.pop %v1346
  %v1459 = vmul.f32 %v1458, 0.6931472
  %v1460 = vlog2.pop %v1347
  %v1461 = vmul.f32 %v1460, 0.6931472
  %v1462 = vlog2.pop %v1348
  %v1463 = vmul.f32 %v1462, 0.6931472
  %v1464 = vlog2.pop %v1349
  %v1465 = vmul.f32 %v1464, 0.6931472
  %v1466 = vlog2.pop %v1350
  %v1467 = vmul.f32 %v1466, 0.6931472
  %v1468 = vlog2.pop %v1351
  %v1469 = vmul.f32 %v1468, 0.6931472
  %v1470 = vlog2.pop %v1352
  %v1471 = vmul.f32 %v1470, 0.6931472
  %v1472 = vlog2.pop %v1353
  %v1473 = vmul.f32 %v1472, 0.6931472
  %v1474 = vlog2.pop %v1354
  %v1475 = vmul.f32 %v1474, 0.6931472
  %v1476 = vlog2.pop %v1355
  %v1477 = vmul.f32 %v1476, 0.6931472
  %v1478 = vlog2.pop %v1356
  %v1479 = vmul.f32 %v1478, 0.6931472
  %v1480 = vlog2.pop %v1357
  %v1481 = vmul.f32 %v1480, 0.6931472
  %v1482 = vlog2.pop %v1358
  %v1483 = vmul.f32 %v1482, 0.6931472
  %v1484 = vlog2.pop %v1359
  %v1485 = vmul.f32 %v1484, 0.6931472
  %v1486 = vlog2.pop %v1360
  %v1487 = vmul.f32 %v1486, 0.6931472
  %v1488 = vlog2.pop %v1361
  %v1489 = vmul.f32 %v1488, 0.6931472
  %v1490 = vadd.f32 %v978, %v1363
  %v1491 = vadd.f32 %v979, %v1365
  %v1492 = vadd.f32 %v980, %v1367
  %v1493 = vadd.f32 %v981, %v1369
  %v1494 = vadd.f32 %v982, %v1371
  %v1495 = vadd.f32 %v983, %v1373
  %v1496 = vadd.f32 %v984, %v1375
  %v1497 = vadd.f32 %v985, %v1377
  %v1498 = vadd.f32 %v986, %v1379
  %v1499 = vadd.f32 %v987, %v1381
  %v1500 = vadd.f32 %v988, %v1383
  %v1501 = vadd.f32 %v989, %v1385
  %v1502 = vadd.f32 %v990, %v1387
  %v1503 = vadd.f32 %v991, %v1389
  %v1504 = vadd.f32 %v992, %v1391
  %v1505 = vadd.f32 %v993, %v1393
  %v1506 = vadd.f32 %v994, %v1395
  %v1507 = vadd.f32 %v995, %v1397
  %v1508 = vadd.f32 %v996, %v1399
  %v1509 = vadd.f32 %v997, %v1401
  %v1510 = vadd.f32 %v998, %v1403
  %v1511 = vadd.f32 %v999, %v1405
  %v1512 = vadd.f32 %v1000, %v1407
  %v1513 = vadd.f32 %v1001, %v1409
  %v1514 = vadd.f32 %v1002, %v1411
  %v1515 = vadd.f32 %v1003, %v1413
  %v1516 = vadd.f32 %v1004, %v1415
  %v1517 = vadd.f32 %v1005, %v1417
  %v1518 = vadd.f32 %v1006, %v1419
  %v1519 = vadd.f32 %v1007, %v1421
  %v1520 = vadd.f32 %v1008, %v1423
  %v1521 = vadd.f32 %v1009, %v1425
  %v1522 = vadd.f32 %v1010, %v1427
  %v1523 = vadd.f32 %v1011, %v1429
  %v1524 = vadd.f32 %v1012, %v1431
  %v1525 = vadd.f32 %v1013, %v1433
  %v1526 = vadd.f32 %v1014, %v1435
  %v1527 = vadd.f32 %v1015, %v1437
  %v1528 = vadd.f32 %v1016, %v1439
  %v1529 = vadd.f32 %v1017, %v1441
  %v1530 = vadd.f32 %v1018, %v1443
  %v1531 = vadd.f32 %v1019, %v1445
  %v1532 = vadd.f32 %v1020, %v1447
  %v1533 = vadd.f32 %v1021, %v1449
  %v1534 = vadd.f32 %v1022, %v1451
  %v1535 = vadd.f32 %v1023, %v1453
  %v1536 = vadd.f32 %v1024, %v1455
  %v1537 = vadd.f32 %v1025, %v1457
  %v1538 = vadd.f32 %v1026, %v1459
  %v1539 = vadd.f32 %v1027, %v1461
  %v1540 = vadd.f32 %v1028, %v1463
  %v1541 = vadd.f32 %v1029, %v1465
  %v1542 = vadd.f32 %v1030, %v1467
  %v1543 = vadd.f32 %v1031, %v1469
  %v1544 = vadd.f32 %v1032, %v1471
  %v1545 = vadd.f32 %v1033, %v1473
  %v1546 = vadd.f32 %v1034, %v1475
  %v1547 = vadd.f32 %v1035, %v1477
  %v1548 = vadd.f32 %v1036, %v1479
  %v1549 = vadd.f32 %v1037, %v1481
  %v1550 = vadd.f32 %v1038, %v1483
  %v1551 = vadd.f32 %v1039, %v1485
  %v1552 = vadd.f32 %v1040, %v1487
  %v1553 = vadd.f32 %v1041, %v1489
  %vm1554 = vcmp.lt.s32.totalorder %v913, 4
  %v1555 = vsel %vm1554, %v914, %v1490
  %v1556 = vsel %vm1554, %v915, %v1491
  %v1557 = vsel %vm1554, %v916, %v1492
  %v1558 = vsel %vm1554, %v917, %v1493
  %v1559 = vsel %vm1554, %v918, %v1494
  %v1560 = vsel %vm1554, %v919, %v1495
  %v1561 = vsel %vm1554, %v920, %v1496
  %v1562 = vsel %vm1554, %v921, %v1497
  %v1563 = vsel %vm1554, %v922, %v1498
  %v1564 = vsel %vm1554, %v923, %v1499
  %v1565 = vsel %vm1554, %v924, %v1500
  %v1566 = vsel %vm1554, %v925, %v1501
  %v1567 = vsel %vm1554, %v926, %v1502
  %v1568 = vsel %vm1554, %v927, %v1503
  %v1569 = vsel %vm1554, %v928, %v1504
  %v1570 = vsel %vm1554, %v929, %v1505
  %v1571 = vsel %vm1554, %v930, %v1506
  %v1572 = vsel %vm1554, %v931, %v1507
  %v1573 = vsel %vm1554, %v932, %v1508
  %v1574 = vsel %vm1554, %v933, %v1509
  %v1575 = vsel %vm1554, %v934, %v1510
  %v1576 = vsel %vm1554, %v935, %v1511
  %v1577 = vsel %vm1554, %v936, %v1512
  %v1578 = vsel %vm1554, %v937, %v1513
  %v1579 = vsel %vm1554, %v938, %v1514
  %v1580 = vsel %vm1554, %v939, %v1515
  %v1581 = vsel %vm1554, %v940, %v1516
  %v1582 = vsel %vm1554, %v941, %v1517
  %v1583 = vsel %vm1554, %v942, %v1518
  %v1584 = vsel %vm1554, %v943, %v1519
  %v1585 = vsel %vm1554, %v944, %v1520
  %v1586 = vsel %vm1554, %v945, %v1521
  %v1587 = vsel %vm1554, %v946, %v1522
  %v1588 = vsel %vm1554, %v947, %v1523
  %v1589 = vsel %vm1554, %v948, %v1524
  %v1590 = vsel %vm1554, %v949, %v1525
  %v1591 = vsel %vm1554, %v950, %v1526
  %v1592 = vsel %vm1554, %v951, %v1527
  %v1593 = vsel %vm1554, %v952, %v1528
  %v1594 = vsel %vm1554, %v953, %v1529
  %v1595 = vsel %vm1554, %v954, %v1530
  %v1596 = vsel %vm1554, %v955, %v1531
  %v1597 = vsel %vm1554, %v956, %v1532
  %v1598 = vsel %vm1554, %v957, %v1533
  %v1599 = vsel %vm1554, %v958, %v1534
  %v1600 = vsel %vm1554, %v959, %v1535
  %v1601 = vsel %vm1554, %v960, %v1536
  %v1602 = vsel %vm1554, %v961, %v1537
  %v1603 = vsel %vm1554, %v962, %v1538
  %v1604 = vsel %vm1554, %v963, %v1539
  %v1605 = vsel %vm1554, %v964, %v1540
  %v1606 = vsel %vm1554, %v965, %v1541
  %v1607 = vsel %vm1554, %v966, %v1542
  %v1608 = vsel %vm1554, %v967, %v1543
  %v1609 = vsel %vm1554, %v968, %v1544
  %v1610 = vsel %vm1554, %v969, %v1545
  %v1611 = vsel %vm1554, %v970, %v1546
  %v1612 = vsel %vm1554, %v971, %v1547
  %v1613 = vsel %vm1554, %v972, %v1548
  %v1614 = vsel %vm1554, %v973, %v1549
  %v1615 = vsel %vm1554, %v974, %v1550
  %v1616 = vsel %vm1554, %v975, %v1551
  %v1617 = vsel %vm1554, %v976, %v1552
  %v1618 = vsel %vm1554, %v977, %v1553
  %1619 = vst [vmem:[%s5] sm:$0xff] %v1555
  %1620 = vst [vmem:[%s5 + $0x8] sm:$0xff] %v1556
  %1621 = vst [vmem:[%s5 + $0x10] sm:$0xff] %v1557
  %1622 = vst [vmem:[%s5 + $0x18] sm:$0xff] %v1558
  %1623 = vst [vmem:[%s5 + $0x20] sm:$0xff] %v1559
  %1624 = vst [vmem:[%s5 + $0x28] sm:$0xff] %v1560
  %1625 = vst [vmem:[%s5 + $0x30] sm:$0xff] %v1561
  %1626 = vst [vmem:[%s5 + $0x38] sm:$0xff] %v1562
  %1627 = vst [vmem:[%s5 + $0x40] sm:$0xff] %v1563
  %1628 = vst [vmem:[%s5 + $0x48] sm:$0xff] %v1564
  %1629 = vst [vmem:[%s5 + $0x50] sm:$0xff] %v1565
  %1630 = vst [vmem:[%s5 + $0x58] sm:$0xff] %v1566
  %1631 = vst [vmem:[%s5 + $0x60] sm:$0xff] %v1567
  %1632 = vst [vmem:[%s5 + $0x68] sm:$0xff] %v1568
  %1633 = vst [vmem:[%s5 + $0x70] sm:$0xff] %v1569
  %1634 = vst [vmem:[%s5 + $0x78] sm:$0xff] %v1570
  %1635 = vst [vmem:[%s5 + $0x80] sm:$0xff] %v1571
  %1636 = vst [vmem:[%s5 + $0x88] sm:$0xff] %v1572
  %1637 = vst [vmem:[%s5 + $0x90] sm:$0xff] %v1573
  %1638 = vst [vmem:[%s5 + $0x98] sm:$0xff] %v1574
  %1639 = vst [vmem:[%s5 + $0xa0] sm:$0xff] %v1575
  %1640 = vst [vmem:[%s5 + $0xa8] sm:$0xff] %v1576
  %1641 = vst [vmem:[%s5 + $0xb0] sm:$0xff] %v1577
  %1642 = vst [vmem:[%s5 + $0xb8] sm:$0xff] %v1578
  %1643 = vst [vmem:[%s5 + $0xc0] sm:$0xff] %v1579
  %1644 = vst [vmem:[%s5 + $0xc8] sm:$0xff] %v1580
  %1645 = vst [vmem:[%s5 + $0xd0] sm:$0xff] %v1581
  %1646 = vst [vmem:[%s5 + $0xd8] sm:$0xff] %v1582
  %1647 = vst [vmem:[%s5 + $0xe0] sm:$0xff] %v1583
  %1648 = vst [vmem:[%s5 + $0xe8] sm:$0xff] %v1584
  %1649 = vst [vmem:[%s5 + $0xf0] sm:$0xff] %v1585
  %1650 = vst [vmem:[%s5 + $0xf8] sm:$0xff] %v1586
  %1651 = vst [vmem:[%s5 + $0x100] sm:$0xff] %v1587
  %1652 = vst [vmem:[%s5 + $0x108] sm:$0xff] %v1588
  %1653 = vst [vmem:[%s5 + $0x110] sm:$0xff] %v1589
  %1654 = vst [vmem:[%s5 + $0x118] sm:$0xff] %v1590
  %1655 = vst [vmem:[%s5 + $0x120] sm:$0xff] %v1591
  %1656 = vst [vmem:[%s5 + $0x128] sm:$0xff] %v1592
  %1657 = vst [vmem:[%s5 + $0x130] sm:$0xff] %v1593
  %1658 = vst [vmem:[%s5 + $0x138] sm:$0xff] %v1594
  %1659 = vst [vmem:[%s5 + $0x140] sm:$0xff] %v1595
  %1660 = vst [vmem:[%s5 + $0x148] sm:$0xff] %v1596
  %1661 = vst [vmem:[%s5 + $0x150] sm:$0xff] %v1597
  %1662 = vst [vmem:[%s5 + $0x158] sm:$0xff] %v1598
  %1663 = vst [vmem:[%s5 + $0x160] sm:$0xff] %v1599
  %1664 = vst [vmem:[%s5 + $0x168] sm:$0xff] %v1600
  %1665 = vst [vmem:[%s5 + $0x170] sm:$0xff] %v1601
  %1666 = vst [vmem:[%s5 + $0x178] sm:$0xff] %v1602
  %1667 = vst [vmem:[%s5 + $0x180] sm:$0xff] %v1603
  %1668 = vst [vmem:[%s5 + $0x188] sm:$0xff] %v1604
  %1669 = vst [vmem:[%s5 + $0x190] sm:$0xff] %v1605
  %1670 = vst [vmem:[%s5 + $0x198] sm:$0xff] %v1606
  %1671 = vst [vmem:[%s5 + $0x1a0] sm:$0xff] %v1607
  %1672 = vst [vmem:[%s5 + $0x1a8] sm:$0xff] %v1608
  %1673 = vst [vmem:[%s5 + $0x1b0] sm:$0xff] %v1609
  %1674 = vst [vmem:[%s5 + $0x1b8] sm:$0xff] %v1610
  %1675 = vst [vmem:[%s5 + $0x1c0] sm:$0xff] %v1611
  %1676 = vst [vmem:[%s5 + $0x1c8] sm:$0xff] %v1612
  %1677 = vst [vmem:[%s5 + $0x1d0] sm:$0xff] %v1613
  %1678 = vst [vmem:[%s5 + $0x1d8] sm:$0xff] %v1614
  %1679 = vst [vmem:[%s5 + $0x1e0] sm:$0xff] %v1615
  %1680 = vst [vmem:[%s5 + $0x1e8] sm:$0xff] %v1616
  %1681 = vst [vmem:[%s5 + $0x1f0] sm:$0xff] %v1617
  %1682 = vst [vmem:[%s5 + $0x1f8] sm:$0xff] %v1618
  // Predicated region
  $region22: #{fn.1} parent=0 // pred_check
    _
  $region23: #{fn.1} parent=0 // pred_check_branch
    %1684 = sbr.rel (0) target = $region25
  $region24: #{fn.1} parent=0 // pred_region
    _
  $region25: #{fn.1} parent=0 // pred_fallthru
    _
  // Predicated region
  $region26: #{fn.1} parent=0 // pred_check
    _
  $region27: #{fn.1} parent=0 // pred_check_branch
    %1686 = sbr.rel (0) target = $region29
  $region28: #{fn.1} parent=0 // pred_region
    _
  $region29: #{fn.1} parent=0 // pred_fallthru
    _

</llo_original>
